<compile_context>
chip_gen: v6e
topology: v6e:2x2x1
jax: 0.10.0
libtpu: 0.0.40
codegen_flags: <defaults>
</compile_context>

<pallas_src>
import functools

import jax
import jax.numpy as jnp
from jax.experimental import pallas as pl
from jax.experimental.pallas import tpu as pltpu


def _round_up(x, m):
    return ((x + m - 1) // m) * m


def _conv_block_kernel(xa_ref, xb_ref, w_ref, b_ref, o_ref, xstk_ref, *,
                       tile, cin, offsets, act_type):
    """One output tile: flat padded-grid rows [t*tile, (t+1)*tile).

    xa_ref   : (Cin, tile)       main window  (rows [t*tile, (t+1)*tile))
    xb_ref   : (Cin, halo)       right halo   (rows [(t+1)*tile, (t+1)*tile+halo))
    w_ref    : (Cout, k^3*Cin)   folded weight slab (resident)
    b_ref    : (Cout, 1)
    o_ref    : (Cout, tile)
    xstk_ref : (k^3*Cin, tile)   VMEM scratch holding the stacked shifted windows
    """
    # Window of flat rows [t*tile, (t+1)*tile + halo): channels on sublanes,
    # flattened (d,h,w) on lanes.  halo >= max tap offset, so every shifted
    # read below stays inside this window.
    xw = jnp.concatenate([xa_ref[...], xb_ref[...]], axis=-1)   # (Cin, tile+halo)

    # Norm ('none') is identity; activation fused here.  act(0) == 0 for the
    # activations handled in-kernel, so the zero padding stays zero.
    if act_type == "relu":
        xw = jnp.maximum(xw, 0.0)
    elif act_type == "leaky_relu":
        xw = jnp.where(xw >= 0, xw, 0.01 * xw)
    elif act_type != "none":
        raise ValueError(f"unsupported in-kernel activation: {act_type}")

    # Stack the k^3 shifted windows along the contraction (sublane) axis so the
    # whole conv becomes ONE fat-K MXU matmul (K = k^3*Cin) instead of k^3
    # skinny K=Cin matmuls + accumulator adds.  Row order is tap-major and
    # matches the folded weight layout built in the wrapper.
    for j, off in enumerate(offsets):
        xstk_ref[j * cin:(j + 1) * cin, :] = xw[:, off:off + tile]

    out = jnp.dot(w_ref[...], xstk_ref[...],
                  preferred_element_type=jnp.float32)           # (Cout, tile)
    o_ref[...] = (out + b_ref[...]).astype(o_ref.dtype)


def conv_block_pallas(x, weight, bias, *, kernel_size, act_type="relu",
                      norm_type="none", tile=1536):
    """ConvBlock forward: Norm(none) -> act -> Conv3d(kernel_size, padding=same).

    x      : (B, Cin, D, H, W)
    weight : (Cout, Cin, k, k, k)   (PyTorch Conv3d layout, cross-correlation)
    bias   : (Cout,)
    """
    if norm_type != "none":
        # TODO(synk): instance/batch norm need a spatial-statistics pre-pass.
        raise NotImplementedError("norm_type != 'none' not implemented")
    if act_type not in ("none", "relu", "leaky_relu", "sigmoid"):
        raise ValueError(f"Invalid activation type: {act_type}")

    B, Cin, D, H, W = x.shape
    Cout = weight.shape[0]
    k = kernel_size
    p = (k - 1) // 2
    Dp, Hp, Wp = D + 2 * p, H + 2 * p, W + 2 * p

    x = x.astype(jnp.float32)
    if act_type == "sigmoid":
        # sigmoid(0) != 0, so it must be applied before zero-padding.
        x = jax.nn.sigmoid(x)
        kern_act = "none"
    else:
        kern_act = act_type

    # Zero-pad the spatial dims and flatten them onto one (lane) axis.
    xp = jnp.pad(x, ((0, 0), (0, 0), (p, p), (p, p), (p, p)))
    x_flat = xp.reshape(B, Cin, Dp * Hp * Wp)

    # Flat-index offset of each kernel tap (kd, kh, kw), tap-major order.
    offsets = tuple(kd * Hp * Wp + kh * Wp + kw
                    for kd in range(k) for kh in range(k) for kw in range(k))
    off_max = offsets[-1]

    # halo: minimal lane-aligned right-overlap covering every tap offset.
    # tile: large (fewer grid steps) and a multiple of halo so the halo block
    #       can be fetched with a static blocked index map ((t+1)*tile/halo).
    halo = _round_up(max(off_max, 1), 128)
    tile = max(_round_up(tile, halo), halo)
    ratio = tile // halo

    n_rows = D * Hp * Wp                       # covers every valid output row
    n_tiles = pl.cdiv(n_rows, tile)
    n_out = n_tiles * tile
    n_x = max(n_out + halo, Dp * Hp * Wp)      # all blocks fully in-bounds
    x_flat = jnp.pad(x_flat, ((0, 0), (0, 0), (0, n_x - Dp * Hp * Wp)))

    # Folded weight slab (Cout, k^3*Cin): column j*Cin + ci <-> tap j, chan ci,
    # matching the tap-major stacking done in the kernel.
    Kdim = k ** 3 * Cin
    w_flat = jnp.transpose(weight, (0, 2, 3, 4, 1)).reshape(Cout, Kdim)
    w_flat = w_flat.astype(jnp.float32)
    b2 = bias.reshape(Cout, 1).astype(jnp.float32)

    kernel = functools.partial(_conv_block_kernel, tile=tile, cin=Cin,
                               offsets=offsets, act_type=kern_act)

    out_flat = pl.pallas_call(
        kernel,
        out_shape=jax.ShapeDtypeStruct((B, Cout, n_out), jnp.float32),
        grid=(B, n_tiles),
        in_specs=[
            pl.BlockSpec((None, Cin, tile), lambda b, t: (b, 0, t)),           # main tile
            pl.BlockSpec((None, Cin, halo), lambda b, t: (b, 0, (t + 1) * ratio)),  # halo
            pl.BlockSpec((Cout, Kdim), lambda b, t: (0, 0)),                   # weights
            pl.BlockSpec((Cout, 1), lambda b, t: (0, 0)),                      # bias
        ],
        out_specs=pl.BlockSpec((None, Cout, tile), lambda b, t: (b, 0, t)),
        scratch_shapes=[pltpu.VMEM((Kdim, tile), jnp.float32)],
        compiler_params=pltpu.CompilerParams(
            dimension_semantics=("parallel", "parallel")),
    )(x_flat, x_flat, w_flat, b2)

    # Drop the padded-grid garbage rows: flat row n = d*Hp*Wp + h*Wp + w.
    out = out_flat[:, :, :n_rows].reshape(B, Cout, D, Hp, Wp)[:, :, :, :H, :W]
    return out


def conv_block_reference(x, weight, bias, *, kernel_size, act_type="relu",
                         norm_type="none"):
    """Pure-JAX mirror of the PyTorch ConvBlock forward for validation."""
    assert norm_type == "none"
    if act_type == "relu":
        a = jnp.maximum(x, 0.0)
    elif act_type == "leaky_relu":
        a = jnp.where(x >= 0, x, 0.01 * x)
    elif act_type == "sigmoid":
        a = jax.nn.sigmoid(x)
    else:
        a = x
    p = (kernel_size - 1) // 2
    out = jax.lax.conv_general_dilated(
        a, weight, window_strides=(1, 1, 1), padding=[(p, p)] * 3,
        dimension_numbers=("NCDHW", "OIDHW", "NCDHW"),
        precision=jax.lax.Precision.HIGHEST)
    return out + bias.reshape(1, -1, 1, 1, 1)


if __name__ == "__main__":
    # Small shapes consistent with the module: B=2, in_chans=4, out_chans=8,
    # 16^3 volume, kernel_size=3.
    B, Cin, Cout = 2, 4, 8
    D = H = W = 16
    k = 3

    key = jax.random.PRNGKey(0)
    kx, kw_, kb = jax.random.split(key, 3)
    x = jax.random.normal(kx, (B, Cin, D, H, W), dtype=jnp.float32)
    weight = jax.random.normal(kw_, (Cout, Cin, k, k, k), dtype=jnp.float32) * 0.1
    bias = jax.random.normal(kb, (Cout,), dtype=jnp.float32) * 0.1

    out = conv_block_pallas(x, weight, bias, kernel_size=k)
    out = jax.block_until_ready(out)

    ref = conv_block_reference(x, weight, bias, kernel_size=k)
    assert out.shape == (B, Cout, D, H, W), out.shape
    max_err = jnp.max(jnp.abs(out - ref))
    assert jnp.allclose(out, ref, atol=2e-3, rtol=2e-3), f"max abs err {max_err}"

    print("KERNEL_OK")
</pallas_src>

<mosaic_0001>
module attributes {stable_mosaic.version = 11 : i64} {
  func.func @_conv_block_kernel(%arg0: i32, %arg1: i32, %arg2: memref<1x4x1536xf32, #tpu.memory_space<vmem>>, %arg3: memref<1x4x768xf32, #tpu.memory_space<vmem>>, %arg4: memref<8x108xf32, #tpu.memory_space<vmem>>, %arg5: memref<8x1xf32, #tpu.memory_space<vmem>>, %arg6: memref<1x8x1536xf32, #tpu.memory_space<vmem>>, %arg7: memref<108x1536xf32, #tpu.memory_space<vmem>>) attributes {dimension_semantics = [#tpu.dimension_semantics<parallel>, #tpu.dimension_semantics<parallel>], iteration_bounds = array<i64: 2, 4>, scalar_prefetch = 0 : i64, scratch_operands = 1 : i64, tpu.core_type = #tpu.core_type<tc>, window_params = [{transform_indices = @transform_0, window_bounds = array<i64: 1, 4, 1536>}, {transform_indices = @transform_1, window_bounds = array<i64: 1, 4, 768>}, {pipeline_mode = #tpu.pipeline_mode<synchronous>, transform_indices = @transform_2, window_bounds = array<i64: 8, 108>}, {pipeline_mode = #tpu.pipeline_mode<synchronous>, transform_indices = @transform_3, window_bounds = array<i64: 8, 1>}, {transform_indices = @transform_4, window_bounds = array<i64: 1, 8, 1536>}]} {
    %c0 = arith.constant 0 : index
    %c0_0 = arith.constant 0 : index
    %c0_1 = arith.constant 0 : index
    %0 = vector.load %arg2[%c0, %c0_0, %c0_1] : memref<1x4x1536xf32, #tpu.memory_space<vmem>>, vector<1x4x1536xf32>
    %1 = vector.shape_cast %0 : vector<1x4x1536xf32> to vector<4x1536xf32>
    %c0_2 = arith.constant 0 : index
    %c0_3 = arith.constant 0 : index
    %c0_4 = arith.constant 0 : index
    %2 = vector.load %arg3[%c0_2, %c0_3, %c0_4] : memref<1x4x768xf32, #tpu.memory_space<vmem>>, vector<1x4x768xf32>
    %3 = vector.shape_cast %2 : vector<1x4x768xf32> to vector<4x768xf32>
    %4 = tpu.concatenate %1, %3 in 1 : vector<4x1536xf32>, vector<4x768xf32> -> vector<4x2304xf32>
    %cst = arith.constant 0.000000e+00 : f32
    %5 = vector.broadcast %cst : f32 to vector<4x2304xf32>
    %6 = arith.maximumf %4, %5 : vector<4x2304xf32>
    %7 = vector.extract_strided_slice %6 {offsets = [0, 0], sizes = [4, 1536], strides = [1, 1]} : vector<4x2304xf32> to vector<4x1536xf32>
    %c0_5 = arith.constant 0 : index
    %c0_6 = arith.constant 0 : index
    %8 = vector.load %arg7[%c0_5, %c0_6] : memref<108x1536xf32, #tpu.memory_space<vmem>>, vector<4x1536xf32>
    tpu.vector_store %arg7[%c0_5, %c0_6], %7 {strides = array<i32>} : memref<108x1536xf32, #tpu.memory_space<vmem>>, vector<4x1536xf32>,
    %9 = vector.extract_strided_slice %6 {offsets = [0, 1], sizes = [4, 1536], strides = [1, 1]} : vector<4x2304xf32> to vector<4x1536xf32>
    %c4 = arith.constant 4 : index
    %c0_7 = arith.constant 0 : index
    %10 = vector.load %arg7[%c4, %c0_7] : memref<108x1536xf32, #tpu.memory_space<vmem>>, vector<4x1536xf32>
    tpu.vector_store %arg7[%c4, %c0_7], %9 {strides = array<i32>} : memref<108x1536xf32, #tpu.memory_space<vmem>>, vector<4x1536xf32>,
    %11 = vector.extract_strided_slice %6 {offsets = [0, 2], sizes = [4, 1536], strides = [1, 1]} : vector<4x2304xf32> to vector<4x1536xf32>
    %c8 = arith.constant 8 : index
    %c0_8 = arith.constant 0 : index
    %12 = vector.load %arg7[%c8, %c0_8] : memref<108x1536xf32, #tpu.memory_space<vmem>>, vector<4x1536xf32>
    tpu.vector_store %arg7[%c8, %c0_8], %11 {strides = array<i32>} : memref<108x1536xf32, #tpu.memory_space<vmem>>, vector<4x1536xf32>,
    %13 = vector.extract_strided_slice %6 {offsets = [0, 18], sizes = [4, 1536], strides = [1, 1]} : vector<4x2304xf32> to vector<4x1536xf32>
    %c12 = arith.constant 12 : index
    %c0_9 = arith.constant 0 : index
    %14 = vector.load %arg7[%c12, %c0_9] : memref<108x1536xf32, #tpu.memory_space<vmem>>, vector<4x1536xf32>
    tpu.vector_store %arg7[%c12, %c0_9], %13 {strides = array<i32>} : memref<108x1536xf32, #tpu.memory_space<vmem>>, vector<4x1536xf32>,
    %15 = vector.extract_strided_slice %6 {offsets = [0, 19], sizes = [4, 1536], strides = [1, 1]} : vector<4x2304xf32> to vector<4x1536xf32>
    %c16 = arith.constant 16 : index
    %c0_10 = arith.constant 0 : index
    %16 = vector.load %arg7[%c16, %c0_10] : memref<108x1536xf32, #tpu.memory_space<vmem>>, vector<4x1536xf32>
    tpu.vector_store %arg7[%c16, %c0_10], %15 {strides = array<i32>} : memref<108x1536xf32, #tpu.memory_space<vmem>>, vector<4x1536xf32>,
    %17 = vector.extract_strided_slice %6 {offsets = [0, 20], sizes = [4, 1536], strides = [1, 1]} : vector<4x2304xf32> to vector<4x1536xf32>
    %c20 = arith.constant 20 : index
    %c0_11 = arith.constant 0 : index
    %18 = vector.load %arg7[%c20, %c0_11] : memref<108x1536xf32, #tpu.memory_space<vmem>>, vector<4x1536xf32>
    tpu.vector_store %arg7[%c20, %c0_11], %17 {strides = array<i32>} : memref<108x1536xf32, #tpu.memory_space<vmem>>, vector<4x1536xf32>,
    %19 = vector.extract_strided_slice %6 {offsets = [0, 36], sizes = [4, 1536], strides = [1, 1]} : vector<4x2304xf32> to vector<4x1536xf32>
    %c24 = arith.constant 24 : index
    %c0_12 = arith.constant 0 : index
    %20 = vector.load %arg7[%c24, %c0_12] : memref<108x1536xf32, #tpu.memory_space<vmem>>, vector<4x1536xf32>
    tpu.vector_store %arg7[%c24, %c0_12], %19 {strides = array<i32>} : memref<108x1536xf32, #tpu.memory_space<vmem>>, vector<4x1536xf32>,
    %21 = vector.extract_strided_slice %6 {offsets = [0, 37], sizes = [4, 1536], strides = [1, 1]} : vector<4x2304xf32> to vector<4x1536xf32>
    %c28 = arith.constant 28 : index
    %c0_13 = arith.constant 0 : index
    %22 = vector.load %arg7[%c28, %c0_13] : memref<108x1536xf32, #tpu.memory_space<vmem>>, vector<4x1536xf32>
    tpu.vector_store %arg7[%c28, %c0_13], %21 {strides = array<i32>} : memref<108x1536xf32, #tpu.memory_space<vmem>>, vector<4x1536xf32>,
    %23 = vector.extract_strided_slice %6 {offsets = [0, 38], sizes = [4, 1536], strides = [1, 1]} : vector<4x2304xf32> to vector<4x1536xf32>
    %c32 = arith.constant 32 : index
    %c0_14 = arith.constant 0 : index
    %24 = vector.load %arg7[%c32, %c0_14] : memref<108x1536xf32, #tpu.memory_space<vmem>>, vector<4x1536xf32>
    tpu.vector_store %arg7[%c32, %c0_14], %23 {strides = array<i32>} : memref<108x1536xf32, #tpu.memory_space<vmem>>, vector<4x1536xf32>,
    %25 = vector.extract_strided_slice %6 {offsets = [0, 324], sizes = [4, 1536], strides = [1, 1]} : vector<4x2304xf32> to vector<4x1536xf32>
    %c36 = arith.constant 36 : index
    %c0_15 = arith.constant 0 : index
    %26 = vector.load %arg7[%c36, %c0_15] : memref<108x1536xf32, #tpu.memory_space<vmem>>, vector<4x1536xf32>
    tpu.vector_store %arg7[%c36, %c0_15], %25 {strides = array<i32>} : memref<108x1536xf32, #tpu.memory_space<vmem>>, vector<4x1536xf32>,
    %27 = vector.extract_strided_slice %6 {offsets = [0, 325], sizes = [4, 1536], strides = [1, 1]} : vector<4x2304xf32> to vector<4x1536xf32>
    %c40 = arith.constant 40 : index
    %c0_16 = arith.constant 0 : index
    %28 = vector.load %arg7[%c40, %c0_16] : memref<108x1536xf32, #tpu.memory_space<vmem>>, vector<4x1536xf32>
    tpu.vector_store %arg7[%c40, %c0_16], %27 {strides = array<i32>} : memref<108x1536xf32, #tpu.memory_space<vmem>>, vector<4x1536xf32>,
    %29 = vector.extract_strided_slice %6 {offsets = [0, 326], sizes = [4, 1536], strides = [1, 1]} : vector<4x2304xf32> to vector<4x1536xf32>
    %c44 = arith.constant 44 : index
    %c0_17 = arith.constant 0 : index
    %30 = vector.load %arg7[%c44, %c0_17] : memref<108x1536xf32, #tpu.memory_space<vmem>>, vector<4x1536xf32>
    tpu.vector_store %arg7[%c44, %c0_17], %29 {strides = array<i32>} : memref<108x1536xf32, #tpu.memory_space<vmem>>, vector<4x1536xf32>,
    %31 = vector.extract_strided_slice %6 {offsets = [0, 342], sizes = [4, 1536], strides = [1, 1]} : vector<4x2304xf32> to vector<4x1536xf32>
    %c48 = arith.constant 48 : index
    %c0_18 = arith.constant 0 : index
    %32 = vector.load %arg7[%c48, %c0_18] : memref<108x1536xf32, #tpu.memory_space<vmem>>, vector<4x1536xf32>
    tpu.vector_store %arg7[%c48, %c0_18], %31 {strides = array<i32>} : memref<108x1536xf32, #tpu.memory_space<vmem>>, vector<4x1536xf32>,
    %33 = vector.extract_strided_slice %6 {offsets = [0, 343], sizes = [4, 1536], strides = [1, 1]} : vector<4x2304xf32> to vector<4x1536xf32>
    %c52 = arith.constant 52 : index
    %c0_19 = arith.constant 0 : index
    %34 = vector.load %arg7[%c52, %c0_19] : memref<108x1536xf32, #tpu.memory_space<vmem>>, vector<4x1536xf32>
    tpu.vector_store %arg7[%c52, %c0_19], %33 {strides = array<i32>} : memref<108x1536xf32, #tpu.memory_space<vmem>>, vector<4x1536xf32>,
    %35 = vector.extract_strided_slice %6 {offsets = [0, 344], sizes = [4, 1536], strides = [1, 1]} : vector<4x2304xf32> to vector<4x1536xf32>
    %c56 = arith.constant 56 : index
    %c0_20 = arith.constant 0 : index
    %36 = vector.load %arg7[%c56, %c0_20] : memref<108x1536xf32, #tpu.memory_space<vmem>>, vector<4x1536xf32>
    tpu.vector_store %arg7[%c56, %c0_20], %35 {strides = array<i32>} : memref<108x1536xf32, #tpu.memory_space<vmem>>, vector<4x1536xf32>,
    %37 = vector.extract_strided_slice %6 {offsets = [0, 360], sizes = [4, 1536], strides = [1, 1]} : vector<4x2304xf32> to vector<4x1536xf32>
    %c60 = arith.constant 60 : index
    %c0_21 = arith.constant 0 : index
    %38 = vector.load %arg7[%c60, %c0_21] : memref<108x1536xf32, #tpu.memory_space<vmem>>, vector<4x1536xf32>
    tpu.vector_store %arg7[%c60, %c0_21], %37 {strides = array<i32>} : memref<108x1536xf32, #tpu.memory_space<vmem>>, vector<4x1536xf32>,
    %39 = vector.extract_strided_slice %6 {offsets = [0, 361], sizes = [4, 1536], strides = [1, 1]} : vector<4x2304xf32> to vector<4x1536xf32>
    %c64 = arith.constant 64 : index
    %c0_22 = arith.constant 0 : index
    %40 = vector.load %arg7[%c64, %c0_22] : memref<108x1536xf32, #tpu.memory_space<vmem>>, vector<4x1536xf32>
    tpu.vector_store %arg7[%c64, %c0_22], %39 {strides = array<i32>} : memref<108x1536xf32, #tpu.memory_space<vmem>>, vector<4x1536xf32>,
    %41 = vector.extract_strided_slice %6 {offsets = [0, 362], sizes = [4, 1536], strides = [1, 1]} : vector<4x2304xf32> to vector<4x1536xf32>
    %c68 = arith.constant 68 : index
    %c0_23 = arith.constant 0 : index
    %42 = vector.load %arg7[%c68, %c0_23] : memref<108x1536xf32, #tpu.memory_space<vmem>>, vector<4x1536xf32>
    tpu.vector_store %arg7[%c68, %c0_23], %41 {strides = array<i32>} : memref<108x1536xf32, #tpu.memory_space<vmem>>, vector<4x1536xf32>,
    %43 = vector.extract_strided_slice %6 {offsets = [0, 648], sizes = [4, 1536], strides = [1, 1]} : vector<4x2304xf32> to vector<4x1536xf32>
    %c72 = arith.constant 72 : index
    %c0_24 = arith.constant 0 : index
    %44 = vector.load %arg7[%c72, %c0_24] : memref<108x1536xf32, #tpu.memory_space<vmem>>, vector<4x1536xf32>
    tpu.vector_store %arg7[%c72, %c0_24], %43 {strides = array<i32>} : memref<108x1536xf32, #tpu.memory_space<vmem>>, vector<4x1536xf32>,
    %45 = vector.extract_strided_slice %6 {offsets = [0, 649], sizes = [4, 1536], strides = [1, 1]} : vector<4x2304xf32> to vector<4x1536xf32>
    %c76 = arith.constant 76 : index
    %c0_25 = arith.constant 0 : index
    %46 = vector.load %arg7[%c76, %c0_25] : memref<108x1536xf32, #tpu.memory_space<vmem>>, vector<4x1536xf32>
    tpu.vector_store %arg7[%c76, %c0_25], %45 {strides = array<i32>} : memref<108x1536xf32, #tpu.memory_space<vmem>>, vector<4x1536xf32>,
    %47 = vector.extract_strided_slice %6 {offsets = [0, 650], sizes = [4, 1536], strides = [1, 1]} : vector<4x2304xf32> to vector<4x1536xf32>
    %c80 = arith.constant 80 : index
    %c0_26 = arith.constant 0 : index
    %48 = vector.load %arg7[%c80, %c0_26] : memref<108x1536xf32, #tpu.memory_space<vmem>>, vector<4x1536xf32>
    tpu.vector_store %arg7[%c80, %c0_26], %47 {strides = array<i32>} : memref<108x1536xf32, #tpu.memory_space<vmem>>, vector<4x1536xf32>,
    %49 = vector.extract_strided_slice %6 {offsets = [0, 666], sizes = [4, 1536], strides = [1, 1]} : vector<4x2304xf32> to vector<4x1536xf32>
    %c84 = arith.constant 84 : index
    %c0_27 = arith.constant 0 : index
    %50 = vector.load %arg7[%c84, %c0_27] : memref<108x1536xf32, #tpu.memory_space<vmem>>, vector<4x1536xf32>
    tpu.vector_store %arg7[%c84, %c0_27], %49 {strides = array<i32>} : memref<108x1536xf32, #tpu.memory_space<vmem>>, vector<4x1536xf32>,
    %51 = vector.extract_strided_slice %6 {offsets = [0, 667], sizes = [4, 1536], strides = [1, 1]} : vector<4x2304xf32> to vector<4x1536xf32>
    %c88 = arith.constant 88 : index
    %c0_28 = arith.constant 0 : index
    %52 = vector.load %arg7[%c88, %c0_28] : memref<108x1536xf32, #tpu.memory_space<vmem>>, vector<4x1536xf32>
    tpu.vector_store %arg7[%c88, %c0_28], %51 {strides = array<i32>} : memref<108x1536xf32, #tpu.memory_space<vmem>>, vector<4x1536xf32>,
    %53 = vector.extract_strided_slice %6 {offsets = [0, 668], sizes = [4, 1536], strides = [1, 1]} : vector<4x2304xf32> to vector<4x1536xf32>
    %c92 = arith.constant 92 : index
    %c0_29 = arith.constant 0 : index
    %54 = vector.load %arg7[%c92, %c0_29] : memref<108x1536xf32, #tpu.memory_space<vmem>>, vector<4x1536xf32>
    tpu.vector_store %arg7[%c92, %c0_29], %53 {strides = array<i32>} : memref<108x1536xf32, #tpu.memory_space<vmem>>, vector<4x1536xf32>,
    %55 = vector.extract_strided_slice %6 {offsets = [0, 684], sizes = [4, 1536], strides = [1, 1]} : vector<4x2304xf32> to vector<4x1536xf32>
    %c96 = arith.constant 96 : index
    %c0_30 = arith.constant 0 : index
    %56 = vector.load %arg7[%c96, %c0_30] : memref<108x1536xf32, #tpu.memory_space<vmem>>, vector<4x1536xf32>
    tpu.vector_store %arg7[%c96, %c0_30], %55 {strides = array<i32>} : memref<108x1536xf32, #tpu.memory_space<vmem>>, vector<4x1536xf32>,
    %57 = vector.extract_strided_slice %6 {offsets = [0, 685], sizes = [4, 1536], strides = [1, 1]} : vector<4x2304xf32> to vector<4x1536xf32>
    %c100 = arith.constant 100 : index
    %c0_31 = arith.constant 0 : index
    %58 = vector.load %arg7[%c100, %c0_31] : memref<108x1536xf32, #tpu.memory_space<vmem>>, vector<4x1536xf32>
    tpu.vector_store %arg7[%c100, %c0_31], %57 {strides = array<i32>} : memref<108x1536xf32, #tpu.memory_space<vmem>>, vector<4x1536xf32>,
    %59 = vector.extract_strided_slice %6 {offsets = [0, 686], sizes = [4, 1536], strides = [1, 1]} : vector<4x2304xf32> to vector<4x1536xf32>
    %c104 = arith.constant 104 : index
    %c0_32 = arith.constant 0 : index
    %60 = vector.load %arg7[%c104, %c0_32] : memref<108x1536xf32, #tpu.memory_space<vmem>>, vector<4x1536xf32>
    tpu.vector_store %arg7[%c104, %c0_32], %59 {strides = array<i32>} : memref<108x1536xf32, #tpu.memory_space<vmem>>, vector<4x1536xf32>,
    %c0_33 = arith.constant 0 : index
    %c0_34 = arith.constant 0 : index
    %61 = vector.load %arg4[%c0_33, %c0_34] : memref<8x108xf32, #tpu.memory_space<vmem>>, vector<8x108xf32>
    %c0_35 = arith.constant 0 : index
    %c0_36 = arith.constant 0 : index
    %62 = vector.load %arg7[%c0_35, %c0_36] : memref<108x1536xf32, #tpu.memory_space<vmem>>, vector<108x1536xf32>
    %cst_37 = arith.constant dense<0.000000e+00> : vector<8x1536xf32>
    %63 = tpu.matmul %61, %62, %cst_37 {dimension_numbers = #tpu.dot_dimension_numbers<[1], [0], [0], [1], [0, 0, 1, 1], [], []>} : vector<8x108xf32>, vector<108x1536xf32>, vector<8x1536xf32> -> vector<8x1536xf32>
    %c0_38 = arith.constant 0 : index
    %c0_39 = arith.constant 0 : index
    %64 = vector.load %arg5[%c0_38, %c0_39] : memref<8x1xf32, #tpu.memory_space<vmem>>, vector<8x1xf32>
    %65 = vector.broadcast %64 : vector<8x1xf32> to vector<8x1536xf32>
    %66 = arith.addf %63, %65 : vector<8x1536xf32>
    %c0_40 = arith.constant 0 : index
    %c0_41 = arith.constant 0 : index
    %c0_42 = arith.constant 0 : index
    %67 = vector.load %arg6[%c0_40, %c0_41, %c0_42] : memref<1x8x1536xf32, #tpu.memory_space<vmem>>, vector<1x8x1536xf32>
    %68 = vector.shape_cast %67 : vector<1x8x1536xf32> to vector<8x1536xf32>
    %69 = vector.shape_cast %66 : vector<8x1536xf32> to vector<1x8x1536xf32>
    tpu.vector_store %arg6[%c0_40, %c0_41, %c0_42], %69 {strides = array<i32>} : memref<1x8x1536xf32, #tpu.memory_space<vmem>>, vector<1x8x1536xf32>,
    return
  }
  func.func @transform_0(%arg0: i32, %arg1: i32) -> (i32, i32, i32) {
    %c0_i32 = arith.constant 0 : i32
    %c0_i32_0 = arith.constant 0 : i32
    return %arg0, %c0_i32, %arg1 : i32, i32, i32
  }
  func.func @transform_1(%arg0: i32, %arg1: i32) -> (i32, i32, i32) {
    %c1_i32 = arith.constant 1 : i32
    %0 = arith.addi %arg1, %c1_i32 : i32
    %c2_i32 = arith.constant 2 : i32
    %1 = arith.muli %0, %c2_i32 : i32
    %c0_i32 = arith.constant 0 : i32
    %c0_i32_0 = arith.constant 0 : i32
    return %arg0, %c0_i32, %1 : i32, i32, i32
  }
  func.func @transform_2(%arg0: i32, %arg1: i32) -> (i32, i32) {
    %c0_i32 = arith.constant 0 : i32
    %c0_i32_0 = arith.constant 0 : i32
    %c0_i32_1 = arith.constant 0 : i32
    return %c0_i32, %c0_i32_0 : i32, i32
  }
  func.func @transform_3(%arg0: i32, %arg1: i32) -> (i32, i32) {
    %c0_i32 = arith.constant 0 : i32
    %c0_i32_0 = arith.constant 0 : i32
    %c0_i32_1 = arith.constant 0 : i32
    return %c0_i32, %c0_i32_0 : i32, i32
  }
  func.func @transform_4(%arg0: i32, %arg1: i32) -> (i32, i32, i32) {
    %c0_i32 = arith.constant 0 : i32
    %c0_i32_0 = arith.constant 0 : i32
    return %arg0, %c0_i32, %arg1 : i32, i32, i32
  }
}

</mosaic_0001>

<llo_original>
// kernel: tpu_custom_call.1
$region0: #{tpu_custom_call.1}
  #allocation0 [shape = 'u32[]', space=smem, size = 0x4, offset = 0x4, fixed_abs, tag = 'smem constant byte address 0x4 - core index']
  #allocation1 [shape = 'u32[144,128]{1,0:T(1,128)}', space=vmem, size = 0x12000, scoped, tag = 'internal scratch']
  #allocation2 [shape = 'f32[108,1536]{1,0:T(8,128)}', space=vmem, size = 0xa8000, scoped, tag = 'scratch operand']
  %s0 = inlined_call_operand.hbm [shape: f32[2,4,6912], index: 0, kind: input, shape index: {}]
  %s1 = inlined_call_operand.hbm [shape: f32[2,4,6912], index: 1, kind: input, shape index: {}]
  %s2 = inlined_call_operand.vmem [shape: f32[8,108], index: 2, kind: input, shape index: {}]
  %s3 = inlined_call_operand.vmem [shape: f32[8,1], index: 3, kind: input, shape index: {}]
  %s4 = inlined_call_operand.hbm [shape: f32[2,8,6144], index: 4, kind: output, shape index: {}]
  %s5 = sld [smem:[#allocation0]]
  $region57: #{tpu_custom_call.1} parent=0
    _
  %s7 = ssub.s32 1, %s5
  %s8 = scalar_select 0, %s7, %s5
  $region1: #{tpu_custom_call.1} parent=0
    #allocation3 [shape = 'u8[49152]{0}', space=vmem, size = 0xc000, scoped, tag = 'input window, operand 0']
    #allocation4 [shape = 's32[2]{0}', space=sflag, size = 0x8, scoped, tag = 'scoped memory for tpu_custom_call.1']
    #allocation5 [shape = 's32[2]{0}', space=sflag, size = 0x8, scoped, tag = 'scoped memory for tpu_custom_call.1']
    #allocation6 [shape = 'u8[24576]{0}', space=vmem, size = 0x6000, scoped, tag = 'input window, operand 1']
    #allocation7 [shape = 's32[2]{0}', space=sflag, size = 0x8, scoped, tag = 'scoped memory for tpu_custom_call.1']
    #allocation8 [shape = 'u8[98304]{0}', space=vmem, size = 0x18000, scoped, tag = 'output window, operand 0']
    %9 = vsyncpa [#allocation4], 0
    %s10 = scalar_lea.sflag [#allocation4], 1
    %11 = vsyncpa %s10, 0
    %12 = vsyncpa [#allocation7], 0
    %s13 = scalar_lea.sflag [#allocation7], 1
    %14 = vsyncpa %s13, 0
    %15 = vsyncpa [#allocation5], 0
    %s16 = scalar_lea.sflag [#allocation5], 1
    %17 = vsyncpa %s16, 0
    loop: start=0, step=1, limit=10
    $region2: #{tpu_custom_call.1} parent=1 // loop_pre_header
      _
    $region3: #{tpu_custom_call.1} parent=1 // loop_header
      %s19 = sphi 0, %s23
      %p20 = scmp.ge.s32.totalorder %s19, 10
      %s26 = sphi 0, %s38
      %s27 = sphi 0, %s34
      %s28 = sphi 0, %s26
      %s29 = sphi 0, %s27
      %s30 = sphi 0, %s28
      %s31 = sphi 0, %s29
      %s43 = sphi 0, %s45
      %s46 = sphi 0, %s43
      %s47 = sphi 0, %s46
      %s63 = sphi 0, %s47
      %s75 = sphi 0, %s77
      %s78 = sphi 0, %s75
      %s79 = sphi 0, %s78
      %s95 = sphi 0, %s79
      %s99 = sphi 0, %s99
      %s101 = sphi 0, %s99
      %s102 = sphi 0, %s101
      %s116 = sphi 0, %s102
      %s120 = sphi 0, %s120
      %s122 = sphi 0, %s120
      %s123 = sphi 0, %s122
      %s137 = sphi 0, %s123
      %s145 = sphi 0, %s147
      %s148 = sphi 0, %s145
      %s149 = sphi 0, %s148
      %s165 = sphi 0, %s149
    $region4: #{tpu_custom_call.1} parent=1 // loop_header_branch
      %22 = sbr.rel (%p20) target = $region8
    $region5: #{tpu_custom_call.1} parent=1 // loop_body
      %s24 = ssub.s32 %s19, 1
      %s25 = ssub.s32 %s19, 2
      %s32 = sadd.s32 1, %s27
      %p33 = scmp.ge.s32.totalorder %s32, 4
      %s34 = scalar_select %p33, 0, %s32
      %s35 = sadd.s32 1, %s26
      %s36 = scalar_select %p33, %s35, %s26
      %p37 = scmp.ge.s32.totalorder %s36, 2
      %s38 = scalar_select %p37, 0, %s36
      %s39 = ssub.s32 %s26, %s38
      %s40 = ssub.s32 %s27, %s34
      %s41 = sor.u32 %s39, %s40
      %p42 = scmp.eq.s32.totalorder %s41, 0
      %s44 = sadd.s32 %s43, 1
      %s45 = scalar_select %p42, %s43, %s44
      %p48 = pneg %p42
      %p49 = scmp.eq.s32.totalorder %s19, 7
      %p50 = por %p48, %p49
      %p51 = scmp.ne.s32.totalorder %s43, %s46
      %p52 = scmp.eq.s32.totalorder %s19, 0
      %p53 = por %p51, %p52
      %p54 = scmp.ne.s32.totalorder %s43, %s46
      %p55 = scmp.eq.s32.totalorder %s24, 7
      %p56 = por %p54, %p55
      %p57 = scmp.ne.s32.totalorder %s46, %s47
      %p58 = scmp.eq.s32.totalorder %s24, 0
      %p59 = por %p57, %p58
      %p60 = scmp.ne.s32.totalorder %s46, %s47
      %p61 = scmp.eq.s32.totalorder %s25, 7
      %p62 = por %p60, %p61
      %p64 = scmp.ne.s32.totalorder %s47, %s63
      %p65 = scmp.eq.s32.totalorder %s25, 0
      %p66 = por %p64, %p65
      %s67 = sadd.s32 %s27, 1
      %s68 = smul.u32 %s67, 2
      %s69 = sadd.s32 %s34, 1
      %s70 = smul.u32 %s69, 2
      %s71 = ssub.s32 %s26, %s38
      %s72 = ssub.s32 %s68, %s70
      %s73 = sor.u32 %s71, %s72
      %p74 = scmp.eq.s32.totalorder %s73, 0
      %s76 = sadd.s32 %s75, 1
      %s77 = scalar_select %p74, %s75, %s76
      %p80 = pneg %p74
      %p81 = scmp.eq.s32.totalorder %s19, 7
      %p82 = por %p80, %p81
      %p83 = scmp.ne.s32.totalorder %s75, %s78
      %p84 = scmp.eq.s32.totalorder %s19, 0
      %p85 = por %p83, %p84
      %p86 = scmp.ne.s32.totalorder %s75, %s78
      %p87 = scmp.eq.s32.totalorder %s24, 7
      %p88 = por %p86, %p87
      %p89 = scmp.ne.s32.totalorder %s78, %s79
      %p90 = scmp.eq.s32.totalorder %s24, 0
      %p91 = por %p89, %p90
      %p92 = scmp.ne.s32.totalorder %s78, %s79
      %p93 = scmp.eq.s32.totalorder %s25, 7
      %p94 = por %p92, %p93
      %p96 = scmp.ne.s32.totalorder %s79, %s95
      %p97 = scmp.eq.s32.totalorder %s25, 0
      %p98 = por %p96, %p97
      %s100 = sadd.s32 %s99, 1
      %p103 = scmp.eq.s32.totalorder %s19, 7
      %p104 = scmp.ne.s32.totalorder %s99, %s101
      %p105 = scmp.eq.s32.totalorder %s19, 0
      %p106 = por %p104, %p105
      %p107 = scmp.ne.s32.totalorder %s99, %s101
      %p108 = scmp.eq.s32.totalorder %s24, 7
      %p109 = por %p107, %p108
      %p110 = scmp.ne.s32.totalorder %s101, %s102
      %p111 = scmp.eq.s32.totalorder %s24, 0
      %p112 = por %p110, %p111
      %p113 = scmp.ne.s32.totalorder %s101, %s102
      %p114 = scmp.eq.s32.totalorder %s25, 7
      %p115 = por %p113, %p114
      %p117 = scmp.ne.s32.totalorder %s102, %s116
      %p118 = scmp.eq.s32.totalorder %s25, 0
      %p119 = por %p117, %p118
      %s121 = sadd.s32 %s120, 1
      %p124 = scmp.eq.s32.totalorder %s19, 7
      %p125 = scmp.ne.s32.totalorder %s120, %s122
      %p126 = scmp.eq.s32.totalorder %s19, 0
      %p127 = por %p125, %p126
      %p128 = scmp.ne.s32.totalorder %s120, %s122
      %p129 = scmp.eq.s32.totalorder %s24, 7
      %p130 = por %p128, %p129
      %p131 = scmp.ne.s32.totalorder %s122, %s123
      %p132 = scmp.eq.s32.totalorder %s24, 0
      %p133 = por %p131, %p132
      %p134 = scmp.ne.s32.totalorder %s122, %s123
      %p135 = scmp.eq.s32.totalorder %s25, 7
      %p136 = por %p134, %p135
      %p138 = scmp.ne.s32.totalorder %s123, %s137
      %p139 = scmp.eq.s32.totalorder %s25, 0
      %p140 = por %p138, %p139
      %s141 = ssub.s32 %s26, %s38
      %s142 = ssub.s32 %s27, %s34
      %s143 = sor.u32 %s141, %s142
      %p144 = scmp.eq.s32.totalorder %s143, 0
      %s146 = sadd.s32 %s145, 1
      %s147 = scalar_select %p144, %s145, %s146
      %p150 = pneg %p144
      %p151 = scmp.eq.s32.totalorder %s19, 7
      %p152 = por %p150, %p151
      %p153 = scmp.ne.s32.totalorder %s145, %s148
      %p154 = scmp.eq.s32.totalorder %s19, 0
      %p155 = por %p153, %p154
      %p156 = scmp.ne.s32.totalorder %s145, %s148
      %p157 = scmp.eq.s32.totalorder %s24, 7
      %p158 = por %p156, %p157
      %p159 = scmp.ne.s32.totalorder %s148, %s149
      %p160 = scmp.eq.s32.totalorder %s24, 0
      %p161 = por %p159, %p160
      %p162 = scmp.ne.s32.totalorder %s148, %s149
      %p163 = scmp.eq.s32.totalorder %s25, 7
      %p164 = por %p162, %p163
      %p166 = scmp.ne.s32.totalorder %s149, %s165
      %p167 = scmp.eq.s32.totalorder %s25, 0
      %p168 = por %p166, %p167
      %p169 = scmp.le.s32.totalorder 1, %s19
      %p170 = scmp.lt.s32.totalorder %s19, 9
      %p171 = pnand %p169, %p170
      %p172 = pneg %p171
      // Predicated region
      $region9: #{tpu_custom_call.1} parent=5 // pred_check
        _
      $region10: #{tpu_custom_call.1} parent=5 // pred_check_branch
        %174 = sbr.rel (%p171) target = $region12
      $region11: #{tpu_custom_call.1} parent=5 // pred_region
        %s175 = ssub.s32 %s19, 1
        // Predicated region
        $region13: #{tpu_custom_call.1} parent=11 // pred_check
          %p176 = pneg %p112
        $region14: #{tpu_custom_call.1} parent=11 // pred_check_branch
          %178 = sbr.rel (%p176) target = $region16
        $region15: #{tpu_custom_call.1} parent=11 // pred_region
          _
        $region16: #{tpu_custom_call.1} parent=11 // pred_fallthru
          _
        // Predicated region
        $region17: #{tpu_custom_call.1} parent=11 // pred_check
          %p179 = pneg %p133
        $region18: #{tpu_custom_call.1} parent=11 // pred_check_branch
          %181 = sbr.rel (%p179) target = $region20
        $region19: #{tpu_custom_call.1} parent=11 // pred_region
          _
        $region20: #{tpu_custom_call.1} parent=11 // pred_fallthru
          _
      $region12: #{tpu_custom_call.1} parent=5 // pred_fallthru
        _
      %p182 = scmp.lt.s32.totalorder %s19, 8
      // Predicated region
      $region21: #{tpu_custom_call.1} parent=5 // pred_check
        %p183 = pneg %p182
      $region22: #{tpu_custom_call.1} parent=5 // pred_check_branch
        %185 = sbr.rel (%p183) target = $region24
      $region23: #{tpu_custom_call.1} parent=5 // pred_region
        // Predicated region
        $region25: #{tpu_custom_call.1} parent=23 // pred_check
          %p186 = pneg %p53
        $region26: #{tpu_custom_call.1} parent=23 // pred_check_branch
          %188 = sbr.rel (%p186) target = $region28
        $region27: #{tpu_custom_call.1} parent=23 // pred_region
          %s189 = sand.u32 %s43, 1
          %s190 = scalar_lea.sflag [#allocation4], %s189
          %s191 = sand.u32 %s43, 1
          %s192 = smul.addr %s191, 48
          %s193 = scalar_lea.vmem [#allocation3], %s192
          %s194 = smul.u32 12, %s27
          %s195 = ssub.s32 54, %s194
          %p196 = scmp.lt.s32.totalorder %s195, 12
          %s197 = scalar_select %p196, %s195, 12
          %s198 = smul.u32 64, %s197
          %s200 = ssub.s32 768, %s198
          %201 = vsyncadd %s190, %s200
          %p202 = scmp.ne.s32.totalorder 0, %s198
          %s203 = smul.addr %s26, 54
          %s204 = sadd.s32 %s194, %s203
          %s205 = smul.addr %s204, 64
          %s206 = scalar_lea.hbm %s0, %s205
          %s207 = smul.u32 %s197, 4
          %s208 = sshll.u32 %s207, 4
          %s209 = sshll.u32 %s193, 4
          %s210 = int_to_ptr.vmem [resolvable:$true] %s209
          %212 = dma.hbm_to_vmem [thread:$0]  (%p202), %s206, %s208, %s210, %s190
        $region28: #{tpu_custom_call.1} parent=23 // pred_fallthru
          _
        // Predicated region
        $region29: #{tpu_custom_call.1} parent=23 // pred_check
          %p213 = pneg %p85
        $region30: #{tpu_custom_call.1} parent=23 // pred_check_branch
          %215 = sbr.rel (%p213) target = $region32
        $region31: #{tpu_custom_call.1} parent=23 // pred_region
          %s216 = sand.u32 %s75, 1
          %s217 = scalar_lea.sflag [#allocation7], %s216
          %s218 = sand.u32 %s75, 1
          %s219 = smul.addr %s218, 24
          %s220 = scalar_lea.vmem [#allocation6], %s219
          %s221 = sadd.s32 %s27, 1
          %s222 = smul.u32 %s221, 2
          %s223 = smul.u32 6, %s222
          %s225 = ssub.s32 384, 384
          %226 = vsyncadd %s217, %s225
          %s227 = smul.addr %s26, 54
          %s228 = sadd.s32 %s223, %s227
          %s229 = smul.addr %s228, 64
          %s230 = scalar_lea.hbm %s1, %s229
          %s232 = sshll.u32 %s220, 4
          %s233 = int_to_ptr.vmem [resolvable:$true] %s232
          %235 = dma.hbm_to_vmem [thread:$0]  %s230, 384, %s233, %s217
        $region32: #{tpu_custom_call.1} parent=23 // pred_fallthru
          _
      $region24: #{tpu_custom_call.1} parent=5 // pred_fallthru
        _
      %p236 = scmp.le.s32.totalorder 1, %s19
      %p237 = scmp.lt.s32.totalorder %s19, 9
      %p238 = pnand %p236, %p237
      %p239 = pneg %p238
      // Predicated region
      $region33: #{tpu_custom_call.1} parent=5 // pred_check
        _
      $region34: #{tpu_custom_call.1} parent=5 // pred_check_branch
        %241 = sbr.rel (%p238) target = $region36
      $region35: #{tpu_custom_call.1} parent=5 // pred_region
        %s242 = ssub.s32 %s19, 1
        %s243 = sand.u32 %s46, 1
        %s244 = scalar_lea.sflag [#allocation4], %s243
        %s245 = sand.u32 %s46, 1
        %s246 = smul.addr %s245, 48
        %s247 = scalar_lea.vmem [#allocation3], %s246
        // Predicated region
        $region37: #{tpu_custom_call.1} parent=35 // pred_check
          %p248 = pneg %p59
        $region38: #{tpu_custom_call.1} parent=35 // pred_check_branch
          %250 = sbr.rel (%p248) target = $region40
        $region39: #{tpu_custom_call.1} parent=35 // pred_region
          %251 = dma.done %s244, 768
        $region40: #{tpu_custom_call.1} parent=35 // pred_fallthru
          _
        %s252 = sand.u32 %s78, 1
        %s253 = scalar_lea.sflag [#allocation7], %s252
        %s254 = sand.u32 %s78, 1
        %s255 = smul.addr %s254, 24
        %s256 = scalar_lea.vmem [#allocation6], %s255
        // Predicated region
        $region41: #{tpu_custom_call.1} parent=35 // pred_check
          %p257 = pneg %p91
        $region42: #{tpu_custom_call.1} parent=35 // pred_check_branch
          %259 = sbr.rel (%p257) target = $region44
        $region43: #{tpu_custom_call.1} parent=35 // pred_region
          %260 = dma.done %s253, 384
        $region44: #{tpu_custom_call.1} parent=35 // pred_fallthru
          _
        %s261 = sand.u32 %s46, 1
        %s262 = scalar_lea.sflag [#allocation4], %s261
        %s263 = sand.u32 %s46, 1
        %s264 = smul.addr %s263, 48
        %s265 = scalar_lea.vmem [#allocation3], %s264
        %p266 = pneg %p59
        %p267 = pneg %p56
        %s268 = sand.u32 %s78, 1
        %s269 = scalar_lea.sflag [#allocation7], %s268
        %s270 = sand.u32 %s78, 1
        %s271 = smul.addr %s270, 24
        %s272 = scalar_lea.vmem [#allocation6], %s271
        %p273 = pneg %p91
        %p274 = pneg %p88
        %p275 = pneg %p112
        %p276 = pneg %p109
        %p277 = pneg %p133
        %p278 = pneg %p130
        %p279 = pneg %p161
        %p280 = pneg %p158
        %s281 = sand.u32 %s148, 1
        %s282 = scalar_lea.sflag [#allocation5], %s281
        %s283 = sand.u32 %s148, 1
        %s284 = smul.addr %s283, 96
        %s285 = scalar_lea.vmem [#allocation8], %s284
        %s286 = smul.u32 12, %s29
        %s287 = ssub.s32 54, %s286
        %p288 = scmp.lt.s32.totalorder %s287, 12
        %s289 = scalar_select %p288, %s287, 12
        %s290 = smul.u32 64, %s289
        %s291 = sadd.s32 %s29, 1
        %s292 = smul.u32 %s291, 2
        %s293 = smul.u32 6, %s292
        %s294 = smul.u32 12, %s29
        %v295 = vld [vmem:[%s247] sm:$0xff]
        %v296 = vld [vmem:[%s247 + $0x8] sm:$0xff]
        %v297 = vld [vmem:[%s247 + $0x10] sm:$0xff]
        %v298 = vld [vmem:[%s247 + $0x18] sm:$0xff]
        %v299 = vld [vmem:[%s247 + $0x20] sm:$0xff]
        %v300 = vld [vmem:[%s247 + $0x28] sm:$0xff]
        %v301 = vld [vmem:[%s256] sm:$0xff]
        %v302 = vld [vmem:[%s256 + $0x8] sm:$0xff]
        %v303 = vld [vmem:[%s256 + $0x10] sm:$0xff]
        %v310 = vcombine.high %v295, %v295
        %v311 = vcombine.high %v296, %v296
        %v312 = vcombine.high %v297, %v297
        %v313 = vcombine.high %v298, %v298
        %v314 = vcombine.high %v299, %v299
        %v315 = vcombine.high %v300, %v300
        %v325 = vcombine.high %v301, %v301
        %v326 = vcombine.high %v302, %v302
        %v327 = vcombine.high %v303, %v303
        %v331 = vmax.f32 %v295, 0.0
        %v332 = vmax.f32 %v310, 0.0
        %v333 = vmax.f32 %v296, 0.0
        %v334 = vmax.f32 %v311, 0.0
        %v335 = vmax.f32 %v297, 0.0
        %v336 = vmax.f32 %v312, 0.0
        %v337 = vmax.f32 %v298, 0.0
        %v338 = vmax.f32 %v313, 0.0
        %v339 = vmax.f32 %v299, 0.0
        %v340 = vmax.f32 %v314, 0.0
        %v341 = vmax.f32 %v300, 0.0
        %v342 = vmax.f32 %v315, 0.0
        %v343 = vmax.f32 %v301, 0.0
        %v344 = vmax.f32 %v325, 0.0
        %v345 = vmax.f32 %v302, 0.0
        %v346 = vmax.f32 %v326, 0.0
        %v347 = vmax.f32 %v303, 0.0
        %v348 = vmax.f32 %v327, 0.0
        %349 = vst [vmem:[#allocation2] sm:$0xf] %v331
        %350 = vst [vmem:[#allocation2 + $0x8] sm:$0xf] %v332
        %351 = vst [vmem:[#allocation2 + $0x10] sm:$0xf] %v333
        %352 = vst [vmem:[#allocation2 + $0x18] sm:$0xf] %v334
        %353 = vst [vmem:[#allocation2 + $0x20] sm:$0xf] %v335
        %354 = vst [vmem:[#allocation2 + $0x28] sm:$0xf] %v336
        %355 = vst [vmem:[#allocation2 + $0x30] sm:$0xf] %v337
        %356 = vst [vmem:[#allocation2 + $0x38] sm:$0xf] %v338
        %357 = vst [vmem:[#allocation2 + $0x40] sm:$0xf] %v339
        %358 = vst [vmem:[#allocation2 + $0x48] sm:$0xf] %v340
        %359 = vst [vmem:[#allocation2 + $0x50] sm:$0xf] %v341
        %360 = vst [vmem:[#allocation2 + $0x58] sm:$0xf] %v342
        %v374 = vrot.slane %v331, 4
        %v375 = vrot.slane %v332, 4
        %v376 = vrot.slane %v333, 4
        %v377 = vrot.slane %v334, 4
        %v378 = vrot.slane %v335, 4
        %v379 = vrot.slane %v336, 4
        %v380 = vrot.slane %v337, 4
        %v381 = vrot.slane %v338, 4
        %v382 = vrot.slane %v339, 4
        %v383 = vrot.slane %v340, 4
        %v384 = vrot.slane %v341, 4
        %v385 = vrot.slane %v342, 4
        %v386 = vrot.slane %v343, 4
        %387 = vrot.lane.b32.xlu0 %v374, 127
        %v388 = vpop.permute.xlu0 %387
        %389 = vrot.lane.b32.xlu0 %v375, 127
        %v390 = vpop.permute.xlu0 %389
        %391 = vrot.lane.b32.xlu0 %v376, 127
        %v392 = vpop.permute.xlu0 %391
        %393 = vrot.lane.b32.xlu0 %v377, 127
        %v394 = vpop.permute.xlu0 %393
        %395 = vrot.lane.b32.xlu0 %v378, 127
        %v396 = vpop.permute.xlu0 %395
        %397 = vrot.lane.b32.xlu0 %v379, 127
        %v398 = vpop.permute.xlu0 %397
        %399 = vrot.lane.b32.xlu0 %v380, 127
        %v400 = vpop.permute.xlu0 %399
        %401 = vrot.lane.b32.xlu0 %v381, 127
        %v402 = vpop.permute.xlu0 %401
        %403 = vrot.lane.b32.xlu0 %v382, 127
        %v404 = vpop.permute.xlu0 %403
        %405 = vrot.lane.b32.xlu0 %v383, 127
        %v406 = vpop.permute.xlu0 %405
        %407 = vrot.lane.b32.xlu0 %v384, 127
        %v408 = vpop.permute.xlu0 %407
        %409 = vrot.lane.b32.xlu0 %v385, 127
        %v410 = vpop.permute.xlu0 %409
        %411 = vrot.lane.b32.xlu0 %v386, 127
        %v412 = vpop.permute.xlu0 %411
        %vm413 = vcmask 1039360
        %v414 = vsel %vm413, %v388, %v390
        %v415 = vsel %vm413, %v390, %v392
        %v416 = vsel %vm413, %v392, %v394
        %v417 = vsel %vm413, %v394, %v396
        %v418 = vsel %vm413, %v396, %v398
        %v419 = vsel %vm413, %v398, %v400
        %v420 = vsel %vm413, %v400, %v402
        %v421 = vsel %vm413, %v402, %v404
        %v422 = vsel %vm413, %v404, %v406
        %v423 = vsel %vm413, %v406, %v408
        %v424 = vsel %vm413, %v408, %v410
        %v425 = vsel %vm413, %v410, %v412
        %438 = vst [vmem:[#allocation2] sm:$0xf0] %v414
        %439 = vst [vmem:[#allocation2 + $0x8] sm:$0xf0] %v415
        %440 = vst [vmem:[#allocation2 + $0x10] sm:$0xf0] %v416
        %441 = vst [vmem:[#allocation2 + $0x18] sm:$0xf0] %v417
        %442 = vst [vmem:[#allocation2 + $0x20] sm:$0xf0] %v418
        %443 = vst [vmem:[#allocation2 + $0x28] sm:$0xf0] %v419
        %444 = vst [vmem:[#allocation2 + $0x30] sm:$0xf0] %v420
        %445 = vst [vmem:[#allocation2 + $0x38] sm:$0xf0] %v421
        %446 = vst [vmem:[#allocation2 + $0x40] sm:$0xf0] %v422
        %447 = vst [vmem:[#allocation2 + $0x48] sm:$0xf0] %v423
        %448 = vst [vmem:[#allocation2 + $0x50] sm:$0xf0] %v424
        %449 = vst [vmem:[#allocation2 + $0x58] sm:$0xf0] %v425
        %450 = vrot.lane.b32.xlu0 %v331, 126
        %v451 = vpop.permute.xlu0 %450
        %452 = vrot.lane.b32.xlu0 %v332, 126
        %v453 = vpop.permute.xlu0 %452
        %454 = vrot.lane.b32.xlu0 %v333, 126
        %v455 = vpop.permute.xlu0 %454
        %456 = vrot.lane.b32.xlu0 %v334, 126
        %v457 = vpop.permute.xlu0 %456
        %458 = vrot.lane.b32.xlu0 %v335, 126
        %v459 = vpop.permute.xlu0 %458
        %460 = vrot.lane.b32.xlu0 %v336, 126
        %v461 = vpop.permute.xlu0 %460
        %462 = vrot.lane.b32.xlu0 %v337, 126
        %v463 = vpop.permute.xlu0 %462
        %464 = vrot.lane.b32.xlu0 %v338, 126
        %v465 = vpop.permute.xlu0 %464
        %466 = vrot.lane.b32.xlu0 %v339, 126
        %v467 = vpop.permute.xlu0 %466
        %468 = vrot.lane.b32.xlu0 %v340, 126
        %v469 = vpop.permute.xlu0 %468
        %470 = vrot.lane.b32.xlu0 %v341, 126
        %v471 = vpop.permute.xlu0 %470
        %472 = vrot.lane.b32.xlu0 %v342, 126
        %v473 = vpop.permute.xlu0 %472
        %474 = vrot.lane.b32.xlu0 %v343, 126
        %v475 = vpop.permute.xlu0 %474
        %vm476 = vcmask 1031168
        %v477 = vsel %vm476, %v451, %v453
        %v478 = vsel %vm476, %v453, %v455
        %v479 = vsel %vm476, %v455, %v457
        %v480 = vsel %vm476, %v457, %v459
        %v481 = vsel %vm476, %v459, %v461
        %v482 = vsel %vm476, %v461, %v463
        %v483 = vsel %vm476, %v463, %v465
        %v484 = vsel %vm476, %v465, %v467
        %v485 = vsel %vm476, %v467, %v469
        %v486 = vsel %vm476, %v469, %v471
        %v487 = vsel %vm476, %v471, %v473
        %v488 = vsel %vm476, %v473, %v475
        %501 = vst [vmem:[#allocation2 + $0x60] sm:$0xf] %v477
        %502 = vst [vmem:[#allocation2 + $0x68] sm:$0xf] %v478
        %503 = vst [vmem:[#allocation2 + $0x70] sm:$0xf] %v479
        %504 = vst [vmem:[#allocation2 + $0x78] sm:$0xf] %v480
        %505 = vst [vmem:[#allocation2 + $0x80] sm:$0xf] %v481
        %506 = vst [vmem:[#allocation2 + $0x88] sm:$0xf] %v482
        %507 = vst [vmem:[#allocation2 + $0x90] sm:$0xf] %v483
        %508 = vst [vmem:[#allocation2 + $0x98] sm:$0xf] %v484
        %509 = vst [vmem:[#allocation2 + $0xa0] sm:$0xf] %v485
        %510 = vst [vmem:[#allocation2 + $0xa8] sm:$0xf] %v486
        %511 = vst [vmem:[#allocation2 + $0xb0] sm:$0xf] %v487
        %512 = vst [vmem:[#allocation2 + $0xb8] sm:$0xf] %v488
        %513 = vrot.lane.b32.xlu0 %v374, 110
        %v514 = vpop.permute.xlu0 %513
        %515 = vrot.lane.b32.xlu0 %v375, 110
        %v516 = vpop.permute.xlu0 %515
        %517 = vrot.lane.b32.xlu0 %v376, 110
        %v518 = vpop.permute.xlu0 %517
        %519 = vrot.lane.b32.xlu0 %v377, 110
        %v520 = vpop.permute.xlu0 %519
        %521 = vrot.lane.b32.xlu0 %v378, 110
        %v522 = vpop.permute.xlu0 %521
        %523 = vrot.lane.b32.xlu0 %v379, 110
        %v524 = vpop.permute.xlu0 %523
        %525 = vrot.lane.b32.xlu0 %v380, 110
        %v526 = vpop.permute.xlu0 %525
        %527 = vrot.lane.b32.xlu0 %v381, 110
        %v528 = vpop.permute.xlu0 %527
        %529 = vrot.lane.b32.xlu0 %v382, 110
        %v530 = vpop.permute.xlu0 %529
        %531 = vrot.lane.b32.xlu0 %v383, 110
        %v532 = vpop.permute.xlu0 %531
        %533 = vrot.lane.b32.xlu0 %v384, 110
        %v534 = vpop.permute.xlu0 %533
        %535 = vrot.lane.b32.xlu0 %v385, 110
        %v536 = vpop.permute.xlu0 %535
        %537 = vrot.lane.b32.xlu0 %v386, 110
        %v538 = vpop.permute.xlu0 %537
        %vm539 = vcmask 900096
        %v540 = vsel %vm539, %v514, %v516
        %v541 = vsel %vm539, %v516, %v518
        %v542 = vsel %vm539, %v518, %v520
        %v543 = vsel %vm539, %v520, %v522
        %v544 = vsel %vm539, %v522, %v524
        %v545 = vsel %vm539, %v524, %v526
        %v546 = vsel %vm539, %v526, %v528
        %v547 = vsel %vm539, %v528, %v530
        %v548 = vsel %vm539, %v530, %v532
        %v549 = vsel %vm539, %v532, %v534
        %v550 = vsel %vm539, %v534, %v536
        %v551 = vsel %vm539, %v536, %v538
        %564 = vst [vmem:[#allocation2 + $0x60] sm:$0xf0] %v540
        %565 = vst [vmem:[#allocation2 + $0x68] sm:$0xf0] %v541
        %566 = vst [vmem:[#allocation2 + $0x70] sm:$0xf0] %v542
        %567 = vst [vmem:[#allocation2 + $0x78] sm:$0xf0] %v543
        %568 = vst [vmem:[#allocation2 + $0x80] sm:$0xf0] %v544
        %569 = vst [vmem:[#allocation2 + $0x88] sm:$0xf0] %v545
        %570 = vst [vmem:[#allocation2 + $0x90] sm:$0xf0] %v546
        %571 = vst [vmem:[#allocation2 + $0x98] sm:$0xf0] %v547
        %572 = vst [vmem:[#allocation2 + $0xa0] sm:$0xf0] %v548
        %573 = vst [vmem:[#allocation2 + $0xa8] sm:$0xf0] %v549
        %574 = vst [vmem:[#allocation2 + $0xb0] sm:$0xf0] %v550
        %575 = vst [vmem:[#allocation2 + $0xb8] sm:$0xf0] %v551
        %576 = vrot.lane.b32.xlu0 %v331, 109
        %v577 = vpop.permute.xlu0 %576
        %578 = vrot.lane.b32.xlu0 %v332, 109
        %v579 = vpop.permute.xlu0 %578
        %580 = vrot.lane.b32.xlu0 %v333, 109
        %v581 = vpop.permute.xlu0 %580
        %582 = vrot.lane.b32.xlu0 %v334, 109
        %v583 = vpop.permute.xlu0 %582
        %584 = vrot.lane.b32.xlu0 %v335, 109
        %v585 = vpop.permute.xlu0 %584
        %586 = vrot.lane.b32.xlu0 %v336, 109
        %v587 = vpop.permute.xlu0 %586
        %588 = vrot.lane.b32.xlu0 %v337, 109
        %v589 = vpop.permute.xlu0 %588
        %590 = vrot.lane.b32.xlu0 %v338, 109
        %v591 = vpop.permute.xlu0 %590
        %592 = vrot.lane.b32.xlu0 %v339, 109
        %v593 = vpop.permute.xlu0 %592
        %594 = vrot.lane.b32.xlu0 %v340, 109
        %v595 = vpop.permute.xlu0 %594
        %596 = vrot.lane.b32.xlu0 %v341, 109
        %v597 = vpop.permute.xlu0 %596
        %598 = vrot.lane.b32.xlu0 %v342, 109
        %v599 = vpop.permute.xlu0 %598
        %600 = vrot.lane.b32.xlu0 %v343, 109
        %v601 = vpop.permute.xlu0 %600
        %vm602 = vcmask 891904
        %v603 = vsel %vm602, %v577, %v579
        %v604 = vsel %vm602, %v579, %v581
        %v605 = vsel %vm602, %v581, %v583
        %v606 = vsel %vm602, %v583, %v585
        %v607 = vsel %vm602, %v585, %v587
        %v608 = vsel %vm602, %v587, %v589
        %v609 = vsel %vm602, %v589, %v591
        %v610 = vsel %vm602, %v591, %v593
        %v611 = vsel %vm602, %v593, %v595
        %v612 = vsel %vm602, %v595, %v597
        %v613 = vsel %vm602, %v597, %v599
        %v614 = vsel %vm602, %v599, %v601
        %627 = vst [vmem:[#allocation2 + $0xc0] sm:$0xf] %v603
        %628 = vst [vmem:[#allocation2 + $0xc8] sm:$0xf] %v604
        %629 = vst [vmem:[#allocation2 + $0xd0] sm:$0xf] %v605
        %630 = vst [vmem:[#allocation2 + $0xd8] sm:$0xf] %v606
        %631 = vst [vmem:[#allocation2 + $0xe0] sm:$0xf] %v607
        %632 = vst [vmem:[#allocation2 + $0xe8] sm:$0xf] %v608
        %633 = vst [vmem:[#allocation2 + $0xf0] sm:$0xf] %v609
        %634 = vst [vmem:[#allocation2 + $0xf8] sm:$0xf] %v610
        %635 = vst [vmem:[#allocation2 + $0x100] sm:$0xf] %v611
        %636 = vst [vmem:[#allocation2 + $0x108] sm:$0xf] %v612
        %637 = vst [vmem:[#allocation2 + $0x110] sm:$0xf] %v613
        %638 = vst [vmem:[#allocation2 + $0x118] sm:$0xf] %v614
        %639 = vrot.lane.b32.xlu0 %v374, 108
        %v640 = vpop.permute.xlu0 %639
        %641 = vrot.lane.b32.xlu0 %v375, 108
        %v642 = vpop.permute.xlu0 %641
        %643 = vrot.lane.b32.xlu0 %v376, 108
        %v644 = vpop.permute.xlu0 %643
        %645 = vrot.lane.b32.xlu0 %v377, 108
        %v646 = vpop.permute.xlu0 %645
        %647 = vrot.lane.b32.xlu0 %v378, 108
        %v648 = vpop.permute.xlu0 %647
        %649 = vrot.lane.b32.xlu0 %v379, 108
        %v650 = vpop.permute.xlu0 %649
        %651 = vrot.lane.b32.xlu0 %v380, 108
        %v652 = vpop.permute.xlu0 %651
        %653 = vrot.lane.b32.xlu0 %v381, 108
        %v654 = vpop.permute.xlu0 %653
        %655 = vrot.lane.b32.xlu0 %v382, 108
        %v656 = vpop.permute.xlu0 %655
        %657 = vrot.lane.b32.xlu0 %v383, 108
        %v658 = vpop.permute.xlu0 %657
        %659 = vrot.lane.b32.xlu0 %v384, 108
        %v660 = vpop.permute.xlu0 %659
        %661 = vrot.lane.b32.xlu0 %v385, 108
        %v662 = vpop.permute.xlu0 %661
        %663 = vrot.lane.b32.xlu0 %v386, 108
        %v664 = vpop.permute.xlu0 %663
        %vm665 = vcmask 883712
        %v666 = vsel %vm665, %v640, %v642
        %v667 = vsel %vm665, %v642, %v644
        %v668 = vsel %vm665, %v644, %v646
        %v669 = vsel %vm665, %v646, %v648
        %v670 = vsel %vm665, %v648, %v650
        %v671 = vsel %vm665, %v650, %v652
        %v672 = vsel %vm665, %v652, %v654
        %v673 = vsel %vm665, %v654, %v656
        %v674 = vsel %vm665, %v656, %v658
        %v675 = vsel %vm665, %v658, %v660
        %v676 = vsel %vm665, %v660, %v662
        %v677 = vsel %vm665, %v662, %v664
        %690 = vst [vmem:[#allocation2 + $0xc0] sm:$0xf0] %v666
        %691 = vst [vmem:[#allocation2 + $0xc8] sm:$0xf0] %v667
        %692 = vst [vmem:[#allocation2 + $0xd0] sm:$0xf0] %v668
        %693 = vst [vmem:[#allocation2 + $0xd8] sm:$0xf0] %v669
        %694 = vst [vmem:[#allocation2 + $0xe0] sm:$0xf0] %v670
        %695 = vst [vmem:[#allocation2 + $0xe8] sm:$0xf0] %v671
        %696 = vst [vmem:[#allocation2 + $0xf0] sm:$0xf0] %v672
        %697 = vst [vmem:[#allocation2 + $0xf8] sm:$0xf0] %v673
        %698 = vst [vmem:[#allocation2 + $0x100] sm:$0xf0] %v674
        %699 = vst [vmem:[#allocation2 + $0x108] sm:$0xf0] %v675
        %700 = vst [vmem:[#allocation2 + $0x110] sm:$0xf0] %v676
        %701 = vst [vmem:[#allocation2 + $0x118] sm:$0xf0] %v677
        %702 = vrot.lane.b32.xlu0 %v331, 92
        %v703 = vpop.permute.xlu0 %702
        %704 = vrot.lane.b32.xlu0 %v332, 92
        %v705 = vpop.permute.xlu0 %704
        %706 = vrot.lane.b32.xlu0 %v333, 92
        %v707 = vpop.permute.xlu0 %706
        %708 = vrot.lane.b32.xlu0 %v334, 92
        %v709 = vpop.permute.xlu0 %708
        %710 = vrot.lane.b32.xlu0 %v335, 92
        %v711 = vpop.permute.xlu0 %710
        %712 = vrot.lane.b32.xlu0 %v336, 92
        %v713 = vpop.permute.xlu0 %712
        %714 = vrot.lane.b32.xlu0 %v337, 92
        %v715 = vpop.permute.xlu0 %714
        %716 = vrot.lane.b32.xlu0 %v338, 92
        %v717 = vpop.permute.xlu0 %716
        %718 = vrot.lane.b32.xlu0 %v339, 92
        %v719 = vpop.permute.xlu0 %718
        %720 = vrot.lane.b32.xlu0 %v340, 92
        %v721 = vpop.permute.xlu0 %720
        %722 = vrot.lane.b32.xlu0 %v341, 92
        %v723 = vpop.permute.xlu0 %722
        %724 = vrot.lane.b32.xlu0 %v342, 92
        %v725 = vpop.permute.xlu0 %724
        %726 = vrot.lane.b32.xlu0 %v343, 92
        %v727 = vpop.permute.xlu0 %726
        %vm728 = vcmask 752640
        %v729 = vsel %vm728, %v703, %v705
        %v730 = vsel %vm728, %v705, %v707
        %v731 = vsel %vm728, %v707, %v709
        %v732 = vsel %vm728, %v709, %v711
        %v733 = vsel %vm728, %v711, %v713
        %v734 = vsel %vm728, %v713, %v715
        %v735 = vsel %vm728, %v715, %v717
        %v736 = vsel %vm728, %v717, %v719
        %v737 = vsel %vm728, %v719, %v721
        %v738 = vsel %vm728, %v721, %v723
        %v739 = vsel %vm728, %v723, %v725
        %v740 = vsel %vm728, %v725, %v727
        %753 = vst [vmem:[#allocation2 + $0x120] sm:$0xf] %v729
        %754 = vst [vmem:[#allocation2 + $0x128] sm:$0xf] %v730
        %755 = vst [vmem:[#allocation2 + $0x130] sm:$0xf] %v731
        %756 = vst [vmem:[#allocation2 + $0x138] sm:$0xf] %v732
        %757 = vst [vmem:[#allocation2 + $0x140] sm:$0xf] %v733
        %758 = vst [vmem:[#allocation2 + $0x148] sm:$0xf] %v734
        %759 = vst [vmem:[#allocation2 + $0x150] sm:$0xf] %v735
        %760 = vst [vmem:[#allocation2 + $0x158] sm:$0xf] %v736
        %761 = vst [vmem:[#allocation2 + $0x160] sm:$0xf] %v737
        %762 = vst [vmem:[#allocation2 + $0x168] sm:$0xf] %v738
        %763 = vst [vmem:[#allocation2 + $0x170] sm:$0xf] %v739
        %764 = vst [vmem:[#allocation2 + $0x178] sm:$0xf] %v740
        %765 = vrot.lane.b32.xlu0 %v374, 91
        %v766 = vpop.permute.xlu0 %765
        %767 = vrot.lane.b32.xlu0 %v375, 91
        %v768 = vpop.permute.xlu0 %767
        %769 = vrot.lane.b32.xlu0 %v376, 91
        %v770 = vpop.permute.xlu0 %769
        %771 = vrot.lane.b32.xlu0 %v377, 91
        %v772 = vpop.permute.xlu0 %771
        %773 = vrot.lane.b32.xlu0 %v378, 91
        %v774 = vpop.permute.xlu0 %773
        %775 = vrot.lane.b32.xlu0 %v379, 91
        %v776 = vpop.permute.xlu0 %775
        %777 = vrot.lane.b32.xlu0 %v380, 91
        %v778 = vpop.permute.xlu0 %777
        %779 = vrot.lane.b32.xlu0 %v381, 91
        %v780 = vpop.permute.xlu0 %779
        %781 = vrot.lane.b32.xlu0 %v382, 91
        %v782 = vpop.permute.xlu0 %781
        %783 = vrot.lane.b32.xlu0 %v383, 91
        %v784 = vpop.permute.xlu0 %783
        %785 = vrot.lane.b32.xlu0 %v384, 91
        %v786 = vpop.permute.xlu0 %785
        %787 = vrot.lane.b32.xlu0 %v385, 91
        %v788 = vpop.permute.xlu0 %787
        %789 = vrot.lane.b32.xlu0 %v386, 91
        %v790 = vpop.permute.xlu0 %789
        %vm791 = vcmask 744448
        %v792 = vsel %vm791, %v766, %v768
        %v793 = vsel %vm791, %v768, %v770
        %v794 = vsel %vm791, %v770, %v772
        %v795 = vsel %vm791, %v772, %v774
        %v796 = vsel %vm791, %v774, %v776
        %v797 = vsel %vm791, %v776, %v778
        %v798 = vsel %vm791, %v778, %v780
        %v799 = vsel %vm791, %v780, %v782
        %v800 = vsel %vm791, %v782, %v784
        %v801 = vsel %vm791, %v784, %v786
        %v802 = vsel %vm791, %v786, %v788
        %v803 = vsel %vm791, %v788, %v790
        %816 = vst [vmem:[#allocation2 + $0x120] sm:$0xf0] %v792
        %817 = vst [vmem:[#allocation2 + $0x128] sm:$0xf0] %v793
        %818 = vst [vmem:[#allocation2 + $0x130] sm:$0xf0] %v794
        %819 = vst [vmem:[#allocation2 + $0x138] sm:$0xf0] %v795
        %820 = vst [vmem:[#allocation2 + $0x140] sm:$0xf0] %v796
        %821 = vst [vmem:[#allocation2 + $0x148] sm:$0xf0] %v797
        %822 = vst [vmem:[#allocation2 + $0x150] sm:$0xf0] %v798
        %823 = vst [vmem:[#allocation2 + $0x158] sm:$0xf0] %v799
        %824 = vst [vmem:[#allocation2 + $0x160] sm:$0xf0] %v800
        %825 = vst [vmem:[#allocation2 + $0x168] sm:$0xf0] %v801
        %826 = vst [vmem:[#allocation2 + $0x170] sm:$0xf0] %v802
        %827 = vst [vmem:[#allocation2 + $0x178] sm:$0xf0] %v803
        %828 = vrot.lane.b32.xlu0 %v331, 90
        %v829 = vpop.permute.xlu0 %828
        %830 = vrot.lane.b32.xlu0 %v332, 90
        %v831 = vpop.permute.xlu0 %830
        %832 = vrot.lane.b32.xlu0 %v333, 90
        %v833 = vpop.permute.xlu0 %832
        %834 = vrot.lane.b32.xlu0 %v334, 90
        %v835 = vpop.permute.xlu0 %834
        %836 = vrot.lane.b32.xlu0 %v335, 90
        %v837 = vpop.permute.xlu0 %836
        %838 = vrot.lane.b32.xlu0 %v336, 90
        %v839 = vpop.permute.xlu0 %838
        %840 = vrot.lane.b32.xlu0 %v337, 90
        %v841 = vpop.permute.xlu0 %840
        %842 = vrot.lane.b32.xlu0 %v338, 90
        %v843 = vpop.permute.xlu0 %842
        %844 = vrot.lane.b32.xlu0 %v339, 90
        %v845 = vpop.permute.xlu0 %844
        %846 = vrot.lane.b32.xlu0 %v340, 90
        %v847 = vpop.permute.xlu0 %846
        %848 = vrot.lane.b32.xlu0 %v341, 90
        %v849 = vpop.permute.xlu0 %848
        %850 = vrot.lane.b32.xlu0 %v342, 90
        %v851 = vpop.permute.xlu0 %850
        %852 = vrot.lane.b32.xlu0 %v343, 90
        %v853 = vpop.permute.xlu0 %852
        %vm854 = vcmask 736256
        %v855 = vsel %vm854, %v829, %v831
        %v856 = vsel %vm854, %v831, %v833
        %v857 = vsel %vm854, %v833, %v835
        %v858 = vsel %vm854, %v835, %v837
        %v859 = vsel %vm854, %v837, %v839
        %v860 = vsel %vm854, %v839, %v841
        %v861 = vsel %vm854, %v841, %v843
        %v862 = vsel %vm854, %v843, %v845
        %v863 = vsel %vm854, %v845, %v847
        %v864 = vsel %vm854, %v847, %v849
        %v865 = vsel %vm854, %v849, %v851
        %v866 = vsel %vm854, %v851, %v853
        %879 = vst [vmem:[#allocation2 + $0x180] sm:$0xf] %v855
        %880 = vst [vmem:[#allocation2 + $0x188] sm:$0xf] %v856
        %881 = vst [vmem:[#allocation2 + $0x190] sm:$0xf] %v857
        %882 = vst [vmem:[#allocation2 + $0x198] sm:$0xf] %v858
        %883 = vst [vmem:[#allocation2 + $0x1a0] sm:$0xf] %v859
        %884 = vst [vmem:[#allocation2 + $0x1a8] sm:$0xf] %v860
        %885 = vst [vmem:[#allocation2 + $0x1b0] sm:$0xf] %v861
        %886 = vst [vmem:[#allocation2 + $0x1b8] sm:$0xf] %v862
        %887 = vst [vmem:[#allocation2 + $0x1c0] sm:$0xf] %v863
        %888 = vst [vmem:[#allocation2 + $0x1c8] sm:$0xf] %v864
        %889 = vst [vmem:[#allocation2 + $0x1d0] sm:$0xf] %v865
        %890 = vst [vmem:[#allocation2 + $0x1d8] sm:$0xf] %v866
        %v893 = vrot.slane %v344, 4
        %v894 = vrot.slane %v345, 4
        %895 = vrot.lane.b32.xlu0 %v376, 60
        %v896 = vpop.permute.xlu0 %895
        %897 = vrot.lane.b32.xlu0 %v377, 60
        %v898 = vpop.permute.xlu0 %897
        %899 = vrot.lane.b32.xlu0 %v378, 60
        %v900 = vpop.permute.xlu0 %899
        %901 = vrot.lane.b32.xlu0 %v379, 60
        %v902 = vpop.permute.xlu0 %901
        %903 = vrot.lane.b32.xlu0 %v380, 60
        %v904 = vpop.permute.xlu0 %903
        %905 = vrot.lane.b32.xlu0 %v381, 60
        %v906 = vpop.permute.xlu0 %905
        %907 = vrot.lane.b32.xlu0 %v382, 60
        %v908 = vpop.permute.xlu0 %907
        %909 = vrot.lane.b32.xlu0 %v383, 60
        %v910 = vpop.permute.xlu0 %909
        %911 = vrot.lane.b32.xlu0 %v384, 60
        %v912 = vpop.permute.xlu0 %911
        %913 = vrot.lane.b32.xlu0 %v385, 60
        %v914 = vpop.permute.xlu0 %913
        %915 = vrot.lane.b32.xlu0 %v386, 60
        %v916 = vpop.permute.xlu0 %915
        %917 = vrot.lane.b32.xlu0 %v893, 60
        %v918 = vpop.permute.xlu0 %917
        %919 = vrot.lane.b32.xlu0 %v894, 60
        %v920 = vpop.permute.xlu0 %919
        %vm921 = vcmask 490496
        %v922 = vsel %vm921, %v896, %v898
        %v923 = vsel %vm921, %v898, %v900
        %v924 = vsel %vm921, %v900, %v902
        %v925 = vsel %vm921, %v902, %v904
        %v926 = vsel %vm921, %v904, %v906
        %v927 = vsel %vm921, %v906, %v908
        %v928 = vsel %vm921, %v908, %v910
        %v929 = vsel %vm921, %v910, %v912
        %v930 = vsel %vm921, %v912, %v914
        %v931 = vsel %vm921, %v914, %v916
        %v932 = vsel %vm921, %v916, %v918
        %v933 = vsel %vm921, %v918, %v920
        %946 = vst [vmem:[#allocation2 + $0x180] sm:$0xf0] %v922
        %947 = vst [vmem:[#allocation2 + $0x188] sm:$0xf0] %v923
        %948 = vst [vmem:[#allocation2 + $0x190] sm:$0xf0] %v924
        %949 = vst [vmem:[#allocation2 + $0x198] sm:$0xf0] %v925
        %950 = vst [vmem:[#allocation2 + $0x1a0] sm:$0xf0] %v926
        %951 = vst [vmem:[#allocation2 + $0x1a8] sm:$0xf0] %v927
        %952 = vst [vmem:[#allocation2 + $0x1b0] sm:$0xf0] %v928
        %953 = vst [vmem:[#allocation2 + $0x1b8] sm:$0xf0] %v929
        %954 = vst [vmem:[#allocation2 + $0x1c0] sm:$0xf0] %v930
        %955 = vst [vmem:[#allocation2 + $0x1c8] sm:$0xf0] %v931
        %956 = vst [vmem:[#allocation2 + $0x1d0] sm:$0xf0] %v932
        %957 = vst [vmem:[#allocation2 + $0x1d8] sm:$0xf0] %v933
        %958 = vrot.lane.b32.xlu0 %v333, 59
        %v959 = vpop.permute.xlu0 %958
        %960 = vrot.lane.b32.xlu0 %v334, 59
        %v961 = vpop.permute.xlu0 %960
        %962 = vrot.lane.b32.xlu0 %v335, 59
        %v963 = vpop.permute.xlu0 %962
        %964 = vrot.lane.b32.xlu0 %v336, 59
        %v965 = vpop.permute.xlu0 %964
        %966 = vrot.lane.b32.xlu0 %v337, 59
        %v967 = vpop.permute.xlu0 %966
        %968 = vrot.lane.b32.xlu0 %v338, 59
        %v969 = vpop.permute.xlu0 %968
        %970 = vrot.lane.b32.xlu0 %v339, 59
        %v971 = vpop.permute.xlu0 %970
        %972 = vrot.lane.b32.xlu0 %v340, 59
        %v973 = vpop.permute.xlu0 %972
        %974 = vrot.lane.b32.xlu0 %v341, 59
        %v975 = vpop.permute.xlu0 %974
        %976 = vrot.lane.b32.xlu0 %v342, 59
        %v977 = vpop.permute.xlu0 %976
        %978 = vrot.lane.b32.xlu0 %v343, 59
        %v979 = vpop.permute.xlu0 %978
        %980 = vrot.lane.b32.xlu0 %v344, 59
        %v981 = vpop.permute.xlu0 %980
        %982 = vrot.lane.b32.xlu0 %v345, 59
        %v983 = vpop.permute.xlu0 %982
        %vm984 = vcmask 482304
        %v985 = vsel %vm984, %v959, %v961
        %v986 = vsel %vm984, %v961, %v963
        %v987 = vsel %vm984, %v963, %v965
        %v988 = vsel %vm984, %v965, %v967
        %v989 = vsel %vm984, %v967, %v969
        %v990 = vsel %vm984, %v969, %v971
        %v991 = vsel %vm984, %v971, %v973
        %v992 = vsel %vm984, %v973, %v975
        %v993 = vsel %vm984, %v975, %v977
        %v994 = vsel %vm984, %v977, %v979
        %v995 = vsel %vm984, %v979, %v981
        %v996 = vsel %vm984, %v981, %v983
        %1009 = vst [vmem:[#allocation2 + $0x1e0] sm:$0xf] %v985
        %1010 = vst [vmem:[#allocation2 + $0x1e8] sm:$0xf] %v986
        %1011 = vst [vmem:[#allocation2 + $0x1f0] sm:$0xf] %v987
        %1012 = vst [vmem:[#allocation2 + $0x1f8] sm:$0xf] %v988
        %1013 = vst [vmem:[#allocation2 + $0x200] sm:$0xf] %v989
        %1014 = vst [vmem:[#allocation2 + $0x208] sm:$0xf] %v990
        %1015 = vst [vmem:[#allocation2 + $0x210] sm:$0xf] %v991
        %1016 = vst [vmem:[#allocation2 + $0x218] sm:$0xf] %v992
        %1017 = vst [vmem:[#allocation2 + $0x220] sm:$0xf] %v993
        %1018 = vst [vmem:[#allocation2 + $0x228] sm:$0xf] %v994
        %1019 = vst [vmem:[#allocation2 + $0x230] sm:$0xf] %v995
        %1020 = vst [vmem:[#allocation2 + $0x238] sm:$0xf] %v996
        %1021 = vrot.lane.b32.xlu0 %v376, 58
        %v1022 = vpop.permute.xlu0 %1021
        %1023 = vrot.lane.b32.xlu0 %v377, 58
        %v1024 = vpop.permute.xlu0 %1023
        %1025 = vrot.lane.b32.xlu0 %v378, 58
        %v1026 = vpop.permute.xlu0 %1025
        %1027 = vrot.lane.b32.xlu0 %v379, 58
        %v1028 = vpop.permute.xlu0 %1027
        %1029 = vrot.lane.b32.xlu0 %v380, 58
        %v1030 = vpop.permute.xlu0 %1029
        %1031 = vrot.lane.b32.xlu0 %v381, 58
        %v1032 = vpop.permute.xlu0 %1031
        %1033 = vrot.lane.b32.xlu0 %v382, 58
        %v1034 = vpop.permute.xlu0 %1033
        %1035 = vrot.lane.b32.xlu0 %v383, 58
        %v1036 = vpop.permute.xlu0 %1035
        %1037 = vrot.lane.b32.xlu0 %v384, 58
        %v1038 = vpop.permute.xlu0 %1037
        %1039 = vrot.lane.b32.xlu0 %v385, 58
        %v1040 = vpop.permute.xlu0 %1039
        %1041 = vrot.lane.b32.xlu0 %v386, 58
        %v1042 = vpop.permute.xlu0 %1041
        %1043 = vrot.lane.b32.xlu0 %v893, 58
        %v1044 = vpop.permute.xlu0 %1043
        %1045 = vrot.lane.b32.xlu0 %v894, 58
        %v1046 = vpop.permute.xlu0 %1045
        %vm1047 = vcmask 474112
        %v1048 = vsel %vm1047, %v1022, %v1024
        %v1049 = vsel %vm1047, %v1024, %v1026
        %v1050 = vsel %vm1047, %v1026, %v1028
        %v1051 = vsel %vm1047, %v1028, %v1030
        %v1052 = vsel %vm1047, %v1030, %v1032
        %v1053 = vsel %vm1047, %v1032, %v1034
        %v1054 = vsel %vm1047, %v1034, %v1036
        %v1055 = vsel %vm1047, %v1036, %v1038
        %v1056 = vsel %vm1047, %v1038, %v1040
        %v1057 = vsel %vm1047, %v1040, %v1042
        %v1058 = vsel %vm1047, %v1042, %v1044
        %v1059 = vsel %vm1047, %v1044, %v1046
        %1072 = vst [vmem:[#allocation2 + $0x1e0] sm:$0xf0] %v1048
        %1073 = vst [vmem:[#allocation2 + $0x1e8] sm:$0xf0] %v1049
        %1074 = vst [vmem:[#allocation2 + $0x1f0] sm:$0xf0] %v1050
        %1075 = vst [vmem:[#allocation2 + $0x1f8] sm:$0xf0] %v1051
        %1076 = vst [vmem:[#allocation2 + $0x200] sm:$0xf0] %v1052
        %1077 = vst [vmem:[#allocation2 + $0x208] sm:$0xf0] %v1053
        %1078 = vst [vmem:[#allocation2 + $0x210] sm:$0xf0] %v1054
        %1079 = vst [vmem:[#allocation2 + $0x218] sm:$0xf0] %v1055
        %1080 = vst [vmem:[#allocation2 + $0x220] sm:$0xf0] %v1056
        %1081 = vst [vmem:[#allocation2 + $0x228] sm:$0xf0] %v1057
        %1082 = vst [vmem:[#allocation2 + $0x230] sm:$0xf0] %v1058
        %1083 = vst [vmem:[#allocation2 + $0x238] sm:$0xf0] %v1059
        %1084 = vrot.lane.b32.xlu0 %v333, 42
        %v1085 = vpop.permute.xlu0 %1084
        %1086 = vrot.lane.b32.xlu0 %v334, 42
        %v1087 = vpop.permute.xlu0 %1086
        %1088 = vrot.lane.b32.xlu0 %v335, 42
        %v1089 = vpop.permute.xlu0 %1088
        %1090 = vrot.lane.b32.xlu0 %v336, 42
        %v1091 = vpop.permute.xlu0 %1090
        %1092 = vrot.lane.b32.xlu0 %v337, 42
        %v1093 = vpop.permute.xlu0 %1092
        %1094 = vrot.lane.b32.xlu0 %v338, 42
        %v1095 = vpop.permute.xlu0 %1094
        %1096 = vrot.lane.b32.xlu0 %v339, 42
        %v1097 = vpop.permute.xlu0 %1096
        %1098 = vrot.lane.b32.xlu0 %v340, 42
        %v1099 = vpop.permute.xlu0 %1098
        %1100 = vrot.lane.b32.xlu0 %v341, 42
        %v1101 = vpop.permute.xlu0 %1100
        %1102 = vrot.lane.b32.xlu0 %v342, 42
        %v1103 = vpop.permute.xlu0 %1102
        %1104 = vrot.lane.b32.xlu0 %v343, 42
        %v1105 = vpop.permute.xlu0 %1104
        %1106 = vrot.lane.b32.xlu0 %v344, 42
        %v1107 = vpop.permute.xlu0 %1106
        %1108 = vrot.lane.b32.xlu0 %v345, 42
        %v1109 = vpop.permute.xlu0 %1108
        %vm1110 = vcmask 343040
        %v1111 = vsel %vm1110, %v1085, %v1087
        %v1112 = vsel %vm1110, %v1087, %v1089
        %v1113 = vsel %vm1110, %v1089, %v1091
        %v1114 = vsel %vm1110, %v1091, %v1093
        %v1115 = vsel %vm1110, %v1093, %v1095
        %v1116 = vsel %vm1110, %v1095, %v1097
        %v1117 = vsel %vm1110, %v1097, %v1099
        %v1118 = vsel %vm1110, %v1099, %v1101
        %v1119 = vsel %vm1110, %v1101, %v1103
        %v1120 = vsel %vm1110, %v1103, %v1105
        %v1121 = vsel %vm1110, %v1105, %v1107
        %v1122 = vsel %vm1110, %v1107, %v1109
        %1135 = vst [vmem:[#allocation2 + $0x240] sm:$0xf] %v1111
        %1136 = vst [vmem:[#allocation2 + $0x248] sm:$0xf] %v1112
        %1137 = vst [vmem:[#allocation2 + $0x250] sm:$0xf] %v1113
        %1138 = vst [vmem:[#allocation2 + $0x258] sm:$0xf] %v1114
        %1139 = vst [vmem:[#allocation2 + $0x260] sm:$0xf] %v1115
        %1140 = vst [vmem:[#allocation2 + $0x268] sm:$0xf] %v1116
        %1141 = vst [vmem:[#allocation2 + $0x270] sm:$0xf] %v1117
        %1142 = vst [vmem:[#allocation2 + $0x278] sm:$0xf] %v1118
        %1143 = vst [vmem:[#allocation2 + $0x280] sm:$0xf] %v1119
        %1144 = vst [vmem:[#allocation2 + $0x288] sm:$0xf] %v1120
        %1145 = vst [vmem:[#allocation2 + $0x290] sm:$0xf] %v1121
        %1146 = vst [vmem:[#allocation2 + $0x298] sm:$0xf] %v1122
        %1147 = vrot.lane.b32.xlu0 %v376, 41
        %v1148 = vpop.permute.xlu0 %1147
        %1149 = vrot.lane.b32.xlu0 %v377, 41
        %v1150 = vpop.permute.xlu0 %1149
        %1151 = vrot.lane.b32.xlu0 %v378, 41
        %v1152 = vpop.permute.xlu0 %1151
        %1153 = vrot.lane.b32.xlu0 %v379, 41
        %v1154 = vpop.permute.xlu0 %1153
        %1155 = vrot.lane.b32.xlu0 %v380, 41
        %v1156 = vpop.permute.xlu0 %1155
        %1157 = vrot.lane.b32.xlu0 %v381, 41
        %v1158 = vpop.permute.xlu0 %1157
        %1159 = vrot.lane.b32.xlu0 %v382, 41
        %v1160 = vpop.permute.xlu0 %1159
        %1161 = vrot.lane.b32.xlu0 %v383, 41
        %v1162 = vpop.permute.xlu0 %1161
        %1163 = vrot.lane.b32.xlu0 %v384, 41
        %v1164 = vpop.permute.xlu0 %1163
        %1165 = vrot.lane.b32.xlu0 %v385, 41
        %v1166 = vpop.permute.xlu0 %1165
        %1167 = vrot.lane.b32.xlu0 %v386, 41
        %v1168 = vpop.permute.xlu0 %1167
        %1169 = vrot.lane.b32.xlu0 %v893, 41
        %v1170 = vpop.permute.xlu0 %1169
        %1171 = vrot.lane.b32.xlu0 %v894, 41
        %v1172 = vpop.permute.xlu0 %1171
        %vm1173 = vcmask 334848
        %v1174 = vsel %vm1173, %v1148, %v1150
        %v1175 = vsel %vm1173, %v1150, %v1152
        %v1176 = vsel %vm1173, %v1152, %v1154
        %v1177 = vsel %vm1173, %v1154, %v1156
        %v1178 = vsel %vm1173, %v1156, %v1158
        %v1179 = vsel %vm1173, %v1158, %v1160
        %v1180 = vsel %vm1173, %v1160, %v1162
        %v1181 = vsel %vm1173, %v1162, %v1164
        %v1182 = vsel %vm1173, %v1164, %v1166
        %v1183 = vsel %vm1173, %v1166, %v1168
        %v1184 = vsel %vm1173, %v1168, %v1170
        %v1185 = vsel %vm1173, %v1170, %v1172
        %1198 = vst [vmem:[#allocation2 + $0x240] sm:$0xf0] %v1174
        %1199 = vst [vmem:[#allocation2 + $0x248] sm:$0xf0] %v1175
        %1200 = vst [vmem:[#allocation2 + $0x250] sm:$0xf0] %v1176
        %1201 = vst [vmem:[#allocation2 + $0x258] sm:$0xf0] %v1177
        %1202 = vst [vmem:[#allocation2 + $0x260] sm:$0xf0] %v1178
        %1203 = vst [vmem:[#allocation2 + $0x268] sm:$0xf0] %v1179
        %1204 = vst [vmem:[#allocation2 + $0x270] sm:$0xf0] %v1180
        %1205 = vst [vmem:[#allocation2 + $0x278] sm:$0xf0] %v1181
        %1206 = vst [vmem:[#allocation2 + $0x280] sm:$0xf0] %v1182
        %1207 = vst [vmem:[#allocation2 + $0x288] sm:$0xf0] %v1183
        %1208 = vst [vmem:[#allocation2 + $0x290] sm:$0xf0] %v1184
        %1209 = vst [vmem:[#allocation2 + $0x298] sm:$0xf0] %v1185
        %1210 = vrot.lane.b32.xlu0 %v333, 40
        %v1211 = vpop.permute.xlu0 %1210
        %1212 = vrot.lane.b32.xlu0 %v334, 40
        %v1213 = vpop.permute.xlu0 %1212
        %1214 = vrot.lane.b32.xlu0 %v335, 40
        %v1215 = vpop.permute.xlu0 %1214
        %1216 = vrot.lane.b32.xlu0 %v336, 40
        %v1217 = vpop.permute.xlu0 %1216
        %1218 = vrot.lane.b32.xlu0 %v337, 40
        %v1219 = vpop.permute.xlu0 %1218
        %1220 = vrot.lane.b32.xlu0 %v338, 40
        %v1221 = vpop.permute.xlu0 %1220
        %1222 = vrot.lane.b32.xlu0 %v339, 40
        %v1223 = vpop.permute.xlu0 %1222
        %1224 = vrot.lane.b32.xlu0 %v340, 40
        %v1225 = vpop.permute.xlu0 %1224
        %1226 = vrot.lane.b32.xlu0 %v341, 40
        %v1227 = vpop.permute.xlu0 %1226
        %1228 = vrot.lane.b32.xlu0 %v342, 40
        %v1229 = vpop.permute.xlu0 %1228
        %1230 = vrot.lane.b32.xlu0 %v343, 40
        %v1231 = vpop.permute.xlu0 %1230
        %1232 = vrot.lane.b32.xlu0 %v344, 40
        %v1233 = vpop.permute.xlu0 %1232
        %1234 = vrot.lane.b32.xlu0 %v345, 40
        %v1235 = vpop.permute.xlu0 %1234
        %vm1236 = vcmask 326656
        %v1237 = vsel %vm1236, %v1211, %v1213
        %v1238 = vsel %vm1236, %v1213, %v1215
        %v1239 = vsel %vm1236, %v1215, %v1217
        %v1240 = vsel %vm1236, %v1217, %v1219
        %v1241 = vsel %vm1236, %v1219, %v1221
        %v1242 = vsel %vm1236, %v1221, %v1223
        %v1243 = vsel %vm1236, %v1223, %v1225
        %v1244 = vsel %vm1236, %v1225, %v1227
        %v1245 = vsel %vm1236, %v1227, %v1229
        %v1246 = vsel %vm1236, %v1229, %v1231
        %v1247 = vsel %vm1236, %v1231, %v1233
        %v1248 = vsel %vm1236, %v1233, %v1235
        %1261 = vst [vmem:[#allocation2 + $0x2a0] sm:$0xf] %v1237
        %1262 = vst [vmem:[#allocation2 + $0x2a8] sm:$0xf] %v1238
        %1263 = vst [vmem:[#allocation2 + $0x2b0] sm:$0xf] %v1239
        %1264 = vst [vmem:[#allocation2 + $0x2b8] sm:$0xf] %v1240
        %1265 = vst [vmem:[#allocation2 + $0x2c0] sm:$0xf] %v1241
        %1266 = vst [vmem:[#allocation2 + $0x2c8] sm:$0xf] %v1242
        %1267 = vst [vmem:[#allocation2 + $0x2d0] sm:$0xf] %v1243
        %1268 = vst [vmem:[#allocation2 + $0x2d8] sm:$0xf] %v1244
        %1269 = vst [vmem:[#allocation2 + $0x2e0] sm:$0xf] %v1245
        %1270 = vst [vmem:[#allocation2 + $0x2e8] sm:$0xf] %v1246
        %1271 = vst [vmem:[#allocation2 + $0x2f0] sm:$0xf] %v1247
        %1272 = vst [vmem:[#allocation2 + $0x2f8] sm:$0xf] %v1248
        %1273 = vrot.lane.b32.xlu0 %v376, 24
        %v1274 = vpop.permute.xlu0 %1273
        %1275 = vrot.lane.b32.xlu0 %v377, 24
        %v1276 = vpop.permute.xlu0 %1275
        %1277 = vrot.lane.b32.xlu0 %v378, 24
        %v1278 = vpop.permute.xlu0 %1277
        %1279 = vrot.lane.b32.xlu0 %v379, 24
        %v1280 = vpop.permute.xlu0 %1279
        %1281 = vrot.lane.b32.xlu0 %v380, 24
        %v1282 = vpop.permute.xlu0 %1281
        %1283 = vrot.lane.b32.xlu0 %v381, 24
        %v1284 = vpop.permute.xlu0 %1283
        %1285 = vrot.lane.b32.xlu0 %v382, 24
        %v1286 = vpop.permute.xlu0 %1285
        %1287 = vrot.lane.b32.xlu0 %v383, 24
        %v1288 = vpop.permute.xlu0 %1287
        %1289 = vrot.lane.b32.xlu0 %v384, 24
        %v1290 = vpop.permute.xlu0 %1289
        %1291 = vrot.lane.b32.xlu0 %v385, 24
        %v1292 = vpop.permute.xlu0 %1291
        %1293 = vrot.lane.b32.xlu0 %v386, 24
        %v1294 = vpop.permute.xlu0 %1293
        %1295 = vrot.lane.b32.xlu0 %v893, 24
        %v1296 = vpop.permute.xlu0 %1295
        %1297 = vrot.lane.b32.xlu0 %v894, 24
        %v1298 = vpop.permute.xlu0 %1297
        %vm1299 = vcmask 195584
        %v1300 = vsel %vm1299, %v1274, %v1276
        %v1301 = vsel %vm1299, %v1276, %v1278
        %v1302 = vsel %vm1299, %v1278, %v1280
        %v1303 = vsel %vm1299, %v1280, %v1282
        %v1304 = vsel %vm1299, %v1282, %v1284
        %v1305 = vsel %vm1299, %v1284, %v1286
        %v1306 = vsel %vm1299, %v1286, %v1288
        %v1307 = vsel %vm1299, %v1288, %v1290
        %v1308 = vsel %vm1299, %v1290, %v1292
        %v1309 = vsel %vm1299, %v1292, %v1294
        %v1310 = vsel %vm1299, %v1294, %v1296
        %v1311 = vsel %vm1299, %v1296, %v1298
        %1324 = vst [vmem:[#allocation2 + $0x2a0] sm:$0xf0] %v1300
        %1325 = vst [vmem:[#allocation2 + $0x2a8] sm:$0xf0] %v1301
        %1326 = vst [vmem:[#allocation2 + $0x2b0] sm:$0xf0] %v1302
        %1327 = vst [vmem:[#allocation2 + $0x2b8] sm:$0xf0] %v1303
        %1328 = vst [vmem:[#allocation2 + $0x2c0] sm:$0xf0] %v1304
        %1329 = vst [vmem:[#allocation2 + $0x2c8] sm:$0xf0] %v1305
        %1330 = vst [vmem:[#allocation2 + $0x2d0] sm:$0xf0] %v1306
        %1331 = vst [vmem:[#allocation2 + $0x2d8] sm:$0xf0] %v1307
        %1332 = vst [vmem:[#allocation2 + $0x2e0] sm:$0xf0] %v1308
        %1333 = vst [vmem:[#allocation2 + $0x2e8] sm:$0xf0] %v1309
        %1334 = vst [vmem:[#allocation2 + $0x2f0] sm:$0xf0] %v1310
        %1335 = vst [vmem:[#allocation2 + $0x2f8] sm:$0xf0] %v1311
        %1336 = vrot.lane.b32.xlu0 %v333, 23
        %v1337 = vpop.permute.xlu0 %1336
        %1338 = vrot.lane.b32.xlu0 %v334, 23
        %v1339 = vpop.permute.xlu0 %1338
        %1340 = vrot.lane.b32.xlu0 %v335, 23
        %v1341 = vpop.permute.xlu0 %1340
        %1342 = vrot.lane.b32.xlu0 %v336, 23
        %v1343 = vpop.permute.xlu0 %1342
        %1344 = vrot.lane.b32.xlu0 %v337, 23
        %v1345 = vpop.permute.xlu0 %1344
        %1346 = vrot.lane.b32.xlu0 %v338, 23
        %v1347 = vpop.permute.xlu0 %1346
        %1348 = vrot.lane.b32.xlu0 %v339, 23
        %v1349 = vpop.permute.xlu0 %1348
        %1350 = vrot.lane.b32.xlu0 %v340, 23
        %v1351 = vpop.permute.xlu0 %1350
        %1352 = vrot.lane.b32.xlu0 %v341, 23
        %v1353 = vpop.permute.xlu0 %1352
        %1354 = vrot.lane.b32.xlu0 %v342, 23
        %v1355 = vpop.permute.xlu0 %1354
        %1356 = vrot.lane.b32.xlu0 %v343, 23
        %v1357 = vpop.permute.xlu0 %1356
        %1358 = vrot.lane.b32.xlu0 %v344, 23
        %v1359 = vpop.permute.xlu0 %1358
        %1360 = vrot.lane.b32.xlu0 %v345, 23
        %v1361 = vpop.permute.xlu0 %1360
        %vm1362 = vcmask 187392
        %v1363 = vsel %vm1362, %v1337, %v1339
        %v1364 = vsel %vm1362, %v1339, %v1341
        %v1365 = vsel %vm1362, %v1341, %v1343
        %v1366 = vsel %vm1362, %v1343, %v1345
        %v1367 = vsel %vm1362, %v1345, %v1347
        %v1368 = vsel %vm1362, %v1347, %v1349
        %v1369 = vsel %vm1362, %v1349, %v1351
        %v1370 = vsel %vm1362, %v1351, %v1353
        %v1371 = vsel %vm1362, %v1353, %v1355
        %v1372 = vsel %vm1362, %v1355, %v1357
        %v1373 = vsel %vm1362, %v1357, %v1359
        %v1374 = vsel %vm1362, %v1359, %v1361
        %1387 = vst [vmem:[#allocation2 + $0x300] sm:$0xf] %v1363
        %1388 = vst [vmem:[#allocation2 + $0x308] sm:$0xf] %v1364
        %1389 = vst [vmem:[#allocation2 + $0x310] sm:$0xf] %v1365
        %1390 = vst [vmem:[#allocation2 + $0x318] sm:$0xf] %v1366
        %1391 = vst [vmem:[#allocation2 + $0x320] sm:$0xf] %v1367
        %1392 = vst [vmem:[#allocation2 + $0x328] sm:$0xf] %v1368
        %1393 = vst [vmem:[#allocation2 + $0x330] sm:$0xf] %v1369
        %1394 = vst [vmem:[#allocation2 + $0x338] sm:$0xf] %v1370
        %1395 = vst [vmem:[#allocation2 + $0x340] sm:$0xf] %v1371
        %1396 = vst [vmem:[#allocation2 + $0x348] sm:$0xf] %v1372
        %1397 = vst [vmem:[#allocation2 + $0x350] sm:$0xf] %v1373
        %1398 = vst [vmem:[#allocation2 + $0x358] sm:$0xf] %v1374
        %1399 = vrot.lane.b32.xlu0 %v376, 22
        %v1400 = vpop.permute.xlu0 %1399
        %1401 = vrot.lane.b32.xlu0 %v377, 22
        %v1402 = vpop.permute.xlu0 %1401
        %1403 = vrot.lane.b32.xlu0 %v378, 22
        %v1404 = vpop.permute.xlu0 %1403
        %1405 = vrot.lane.b32.xlu0 %v379, 22
        %v1406 = vpop.permute.xlu0 %1405
        %1407 = vrot.lane.b32.xlu0 %v380, 22
        %v1408 = vpop.permute.xlu0 %1407
        %1409 = vrot.lane.b32.xlu0 %v381, 22
        %v1410 = vpop.permute.xlu0 %1409
        %1411 = vrot.lane.b32.xlu0 %v382, 22
        %v1412 = vpop.permute.xlu0 %1411
        %1413 = vrot.lane.b32.xlu0 %v383, 22
        %v1414 = vpop.permute.xlu0 %1413
        %1415 = vrot.lane.b32.xlu0 %v384, 22
        %v1416 = vpop.permute.xlu0 %1415
        %1417 = vrot.lane.b32.xlu0 %v385, 22
        %v1418 = vpop.permute.xlu0 %1417
        %1419 = vrot.lane.b32.xlu0 %v386, 22
        %v1420 = vpop.permute.xlu0 %1419
        %1421 = vrot.lane.b32.xlu0 %v893, 22
        %v1422 = vpop.permute.xlu0 %1421
        %1423 = vrot.lane.b32.xlu0 %v894, 22
        %v1424 = vpop.permute.xlu0 %1423
        %vm1425 = vcmask 179200
        %v1426 = vsel %vm1425, %v1400, %v1402
        %v1427 = vsel %vm1425, %v1402, %v1404
        %v1428 = vsel %vm1425, %v1404, %v1406
        %v1429 = vsel %vm1425, %v1406, %v1408
        %v1430 = vsel %vm1425, %v1408, %v1410
        %v1431 = vsel %vm1425, %v1410, %v1412
        %v1432 = vsel %vm1425, %v1412, %v1414
        %v1433 = vsel %vm1425, %v1414, %v1416
        %v1434 = vsel %vm1425, %v1416, %v1418
        %v1435 = vsel %vm1425, %v1418, %v1420
        %v1436 = vsel %vm1425, %v1420, %v1422
        %v1437 = vsel %vm1425, %v1422, %v1424
        %1450 = vst [vmem:[#allocation2 + $0x300] sm:$0xf0] %v1426
        %1451 = vst [vmem:[#allocation2 + $0x308] sm:$0xf0] %v1427
        %1452 = vst [vmem:[#allocation2 + $0x310] sm:$0xf0] %v1428
        %1453 = vst [vmem:[#allocation2 + $0x318] sm:$0xf0] %v1429
        %1454 = vst [vmem:[#allocation2 + $0x320] sm:$0xf0] %v1430
        %1455 = vst [vmem:[#allocation2 + $0x328] sm:$0xf0] %v1431
        %1456 = vst [vmem:[#allocation2 + $0x330] sm:$0xf0] %v1432
        %1457 = vst [vmem:[#allocation2 + $0x338] sm:$0xf0] %v1433
        %1458 = vst [vmem:[#allocation2 + $0x340] sm:$0xf0] %v1434
        %1459 = vst [vmem:[#allocation2 + $0x348] sm:$0xf0] %v1435
        %1460 = vst [vmem:[#allocation2 + $0x350] sm:$0xf0] %v1436
        %1461 = vst [vmem:[#allocation2 + $0x358] sm:$0xf0] %v1437
        %1465 = vrot.lane.b32.xlu0 %v336, 120
        %v1466 = vpop.permute.xlu0 %1465
        %1467 = vrot.lane.b32.xlu0 %v337, 120
        %v1468 = vpop.permute.xlu0 %1467
        %1469 = vrot.lane.b32.xlu0 %v338, 120
        %v1470 = vpop.permute.xlu0 %1469
        %1471 = vrot.lane.b32.xlu0 %v339, 120
        %v1472 = vpop.permute.xlu0 %1471
        %1473 = vrot.lane.b32.xlu0 %v340, 120
        %v1474 = vpop.permute.xlu0 %1473
        %1475 = vrot.lane.b32.xlu0 %v341, 120
        %v1476 = vpop.permute.xlu0 %1475
        %1477 = vrot.lane.b32.xlu0 %v342, 120
        %v1478 = vpop.permute.xlu0 %1477
        %1479 = vrot.lane.b32.xlu0 %v343, 120
        %v1480 = vpop.permute.xlu0 %1479
        %1481 = vrot.lane.b32.xlu0 %v344, 120
        %v1482 = vpop.permute.xlu0 %1481
        %1483 = vrot.lane.b32.xlu0 %v345, 120
        %v1484 = vpop.permute.xlu0 %1483
        %1485 = vrot.lane.b32.xlu0 %v346, 120
        %v1486 = vpop.permute.xlu0 %1485
        %1487 = vrot.lane.b32.xlu0 %v347, 120
        %v1488 = vpop.permute.xlu0 %1487
        %1489 = vrot.lane.b32.xlu0 %v348, 120
        %v1490 = vpop.permute.xlu0 %1489
        %vm1491 = vcmask 982016
        %v1492 = vsel %vm1491, %v1466, %v1468
        %v1493 = vsel %vm1491, %v1468, %v1470
        %v1494 = vsel %vm1491, %v1470, %v1472
        %v1495 = vsel %vm1491, %v1472, %v1474
        %v1496 = vsel %vm1491, %v1474, %v1476
        %v1497 = vsel %vm1491, %v1476, %v1478
        %v1498 = vsel %vm1491, %v1478, %v1480
        %v1499 = vsel %vm1491, %v1480, %v1482
        %v1500 = vsel %vm1491, %v1482, %v1484
        %v1501 = vsel %vm1491, %v1484, %v1486
        %v1502 = vsel %vm1491, %v1486, %v1488
        %v1503 = vsel %vm1491, %v1488, %v1490
        %1516 = vst [vmem:[#allocation2 + $0x360] sm:$0xf] %v1492
        %1517 = vst [vmem:[#allocation2 + $0x368] sm:$0xf] %v1493
        %1518 = vst [vmem:[#allocation2 + $0x370] sm:$0xf] %v1494
        %1519 = vst [vmem:[#allocation2 + $0x378] sm:$0xf] %v1495
        %1520 = vst [vmem:[#allocation2 + $0x380] sm:$0xf] %v1496
        %1521 = vst [vmem:[#allocation2 + $0x388] sm:$0xf] %v1497
        %1522 = vst [vmem:[#allocation2 + $0x390] sm:$0xf] %v1498
        %1523 = vst [vmem:[#allocation2 + $0x398] sm:$0xf] %v1499
        %1524 = vst [vmem:[#allocation2 + $0x3a0] sm:$0xf] %v1500
        %1525 = vst [vmem:[#allocation2 + $0x3a8] sm:$0xf] %v1501
        %1526 = vst [vmem:[#allocation2 + $0x3b0] sm:$0xf] %v1502
        %1527 = vst [vmem:[#allocation2 + $0x3b8] sm:$0xf] %v1503
        %v1528 = vrot.slane %v346, 4
        %v1529 = vrot.slane %v347, 4
        %v1530 = vrot.slane %v348, 4
        %1531 = vrot.lane.b32.xlu0 %v379, 119
        %v1532 = vpop.permute.xlu0 %1531
        %1533 = vrot.lane.b32.xlu0 %v380, 119
        %v1534 = vpop.permute.xlu0 %1533
        %1535 = vrot.lane.b32.xlu0 %v381, 119
        %v1536 = vpop.permute.xlu0 %1535
        %1537 = vrot.lane.b32.xlu0 %v382, 119
        %v1538 = vpop.permute.xlu0 %1537
        %1539 = vrot.lane.b32.xlu0 %v383, 119
        %v1540 = vpop.permute.xlu0 %1539
        %1541 = vrot.lane.b32.xlu0 %v384, 119
        %v1542 = vpop.permute.xlu0 %1541
        %1543 = vrot.lane.b32.xlu0 %v385, 119
        %v1544 = vpop.permute.xlu0 %1543
        %1545 = vrot.lane.b32.xlu0 %v386, 119
        %v1546 = vpop.permute.xlu0 %1545
        %1547 = vrot.lane.b32.xlu0 %v893, 119
        %v1548 = vpop.permute.xlu0 %1547
        %1549 = vrot.lane.b32.xlu0 %v894, 119
        %v1550 = vpop.permute.xlu0 %1549
        %1551 = vrot.lane.b32.xlu0 %v1528, 119
        %v1552 = vpop.permute.xlu0 %1551
        %1553 = vrot.lane.b32.xlu0 %v1529, 119
        %v1554 = vpop.permute.xlu0 %1553
        %1555 = vrot.lane.b32.xlu0 %v1530, 119
        %v1556 = vpop.permute.xlu0 %1555
        %vm1557 = vcmask 973824
        %v1558 = vsel %vm1557, %v1532, %v1534
        %v1559 = vsel %vm1557, %v1534, %v1536
        %v1560 = vsel %vm1557, %v1536, %v1538
        %v1561 = vsel %vm1557, %v1538, %v1540
        %v1562 = vsel %vm1557, %v1540, %v1542
        %v1563 = vsel %vm1557, %v1542, %v1544
        %v1564 = vsel %vm1557, %v1544, %v1546
        %v1565 = vsel %vm1557, %v1546, %v1548
        %v1566 = vsel %vm1557, %v1548, %v1550
        %v1567 = vsel %vm1557, %v1550, %v1552
        %v1568 = vsel %vm1557, %v1552, %v1554
        %v1569 = vsel %vm1557, %v1554, %v1556
        %1582 = vst [vmem:[#allocation2 + $0x360] sm:$0xf0] %v1558
        %1583 = vst [vmem:[#allocation2 + $0x368] sm:$0xf0] %v1559
        %1584 = vst [vmem:[#allocation2 + $0x370] sm:$0xf0] %v1560
        %1585 = vst [vmem:[#allocation2 + $0x378] sm:$0xf0] %v1561
        %1586 = vst [vmem:[#allocation2 + $0x380] sm:$0xf0] %v1562
        %1587 = vst [vmem:[#allocation2 + $0x388] sm:$0xf0] %v1563
        %1588 = vst [vmem:[#allocation2 + $0x390] sm:$0xf0] %v1564
        %1589 = vst [vmem:[#allocation2 + $0x398] sm:$0xf0] %v1565
        %1590 = vst [vmem:[#allocation2 + $0x3a0] sm:$0xf0] %v1566
        %1591 = vst [vmem:[#allocation2 + $0x3a8] sm:$0xf0] %v1567
        %1592 = vst [vmem:[#allocation2 + $0x3b0] sm:$0xf0] %v1568
        %1593 = vst [vmem:[#allocation2 + $0x3b8] sm:$0xf0] %v1569
        %1594 = vrot.lane.b32.xlu0 %v336, 118
        %v1595 = vpop.permute.xlu0 %1594
        %1596 = vrot.lane.b32.xlu0 %v337, 118
        %v1597 = vpop.permute.xlu0 %1596
        %1598 = vrot.lane.b32.xlu0 %v338, 118
        %v1599 = vpop.permute.xlu0 %1598
        %1600 = vrot.lane.b32.xlu0 %v339, 118
        %v1601 = vpop.permute.xlu0 %1600
        %1602 = vrot.lane.b32.xlu0 %v340, 118
        %v1603 = vpop.permute.xlu0 %1602
        %1604 = vrot.lane.b32.xlu0 %v341, 118
        %v1605 = vpop.permute.xlu0 %1604
        %1606 = vrot.lane.b32.xlu0 %v342, 118
        %v1607 = vpop.permute.xlu0 %1606
        %1608 = vrot.lane.b32.xlu0 %v343, 118
        %v1609 = vpop.permute.xlu0 %1608
        %1610 = vrot.lane.b32.xlu0 %v344, 118
        %v1611 = vpop.permute.xlu0 %1610
        %1612 = vrot.lane.b32.xlu0 %v345, 118
        %v1613 = vpop.permute.xlu0 %1612
        %1614 = vrot.lane.b32.xlu0 %v346, 118
        %v1615 = vpop.permute.xlu0 %1614
        %1616 = vrot.lane.b32.xlu0 %v347, 118
        %v1617 = vpop.permute.xlu0 %1616
        %1618 = vrot.lane.b32.xlu0 %v348, 118
        %v1619 = vpop.permute.xlu0 %1618
        %vm1620 = vcmask 965632
        %v1621 = vsel %vm1620, %v1595, %v1597
        %v1622 = vsel %vm1620, %v1597, %v1599
        %v1623 = vsel %vm1620, %v1599, %v1601
        %v1624 = vsel %vm1620, %v1601, %v1603
        %v1625 = vsel %vm1620, %v1603, %v1605
        %v1626 = vsel %vm1620, %v1605, %v1607
        %v1627 = vsel %vm1620, %v1607, %v1609
        %v1628 = vsel %vm1620, %v1609, %v1611
        %v1629 = vsel %vm1620, %v1611, %v1613
        %v1630 = vsel %vm1620, %v1613, %v1615
        %v1631 = vsel %vm1620, %v1615, %v1617
        %v1632 = vsel %vm1620, %v1617, %v1619
        %1645 = vst [vmem:[#allocation2 + $0x3c0] sm:$0xf] %v1621
        %1646 = vst [vmem:[#allocation2 + $0x3c8] sm:$0xf] %v1622
        %1647 = vst [vmem:[#allocation2 + $0x3d0] sm:$0xf] %v1623
        %1648 = vst [vmem:[#allocation2 + $0x3d8] sm:$0xf] %v1624
        %1649 = vst [vmem:[#allocation2 + $0x3e0] sm:$0xf] %v1625
        %1650 = vst [vmem:[#allocation2 + $0x3e8] sm:$0xf] %v1626
        %1651 = vst [vmem:[#allocation2 + $0x3f0] sm:$0xf] %v1627
        %1652 = vst [vmem:[#allocation2 + $0x3f8] sm:$0xf] %v1628
        %1653 = vst [vmem:[#allocation2 + $0x400] sm:$0xf] %v1629
        %1654 = vst [vmem:[#allocation2 + $0x408] sm:$0xf] %v1630
        %1655 = vst [vmem:[#allocation2 + $0x410] sm:$0xf] %v1631
        %1656 = vst [vmem:[#allocation2 + $0x418] sm:$0xf] %v1632
        %1657 = vrot.lane.b32.xlu0 %v379, 102
        %v1658 = vpop.permute.xlu0 %1657
        %1659 = vrot.lane.b32.xlu0 %v380, 102
        %v1660 = vpop.permute.xlu0 %1659
        %1661 = vrot.lane.b32.xlu0 %v381, 102
        %v1662 = vpop.permute.xlu0 %1661
        %1663 = vrot.lane.b32.xlu0 %v382, 102
        %v1664 = vpop.permute.xlu0 %1663
        %1665 = vrot.lane.b32.xlu0 %v383, 102
        %v1666 = vpop.permute.xlu0 %1665
        %1667 = vrot.lane.b32.xlu0 %v384, 102
        %v1668 = vpop.permute.xlu0 %1667
        %1669 = vrot.lane.b32.xlu0 %v385, 102
        %v1670 = vpop.permute.xlu0 %1669
        %1671 = vrot.lane.b32.xlu0 %v386, 102
        %v1672 = vpop.permute.xlu0 %1671
        %1673 = vrot.lane.b32.xlu0 %v893, 102
        %v1674 = vpop.permute.xlu0 %1673
        %1675 = vrot.lane.b32.xlu0 %v894, 102
        %v1676 = vpop.permute.xlu0 %1675
        %1677 = vrot.lane.b32.xlu0 %v1528, 102
        %v1678 = vpop.permute.xlu0 %1677
        %1679 = vrot.lane.b32.xlu0 %v1529, 102
        %v1680 = vpop.permute.xlu0 %1679
        %1681 = vrot.lane.b32.xlu0 %v1530, 102
        %v1682 = vpop.permute.xlu0 %1681
        %vm1683 = vcmask 834560
        %v1684 = vsel %vm1683, %v1658, %v1660
        %v1685 = vsel %vm1683, %v1660, %v1662
        %v1686 = vsel %vm1683, %v1662, %v1664
        %v1687 = vsel %vm1683, %v1664, %v1666
        %v1688 = vsel %vm1683, %v1666, %v1668
        %v1689 = vsel %vm1683, %v1668, %v1670
        %v1690 = vsel %vm1683, %v1670, %v1672
        %v1691 = vsel %vm1683, %v1672, %v1674
        %v1692 = vsel %vm1683, %v1674, %v1676
        %v1693 = vsel %vm1683, %v1676, %v1678
        %v1694 = vsel %vm1683, %v1678, %v1680
        %v1695 = vsel %vm1683, %v1680, %v1682
        %1708 = vst [vmem:[#allocation2 + $0x3c0] sm:$0xf0] %v1684
        %1709 = vst [vmem:[#allocation2 + $0x3c8] sm:$0xf0] %v1685
        %1710 = vst [vmem:[#allocation2 + $0x3d0] sm:$0xf0] %v1686
        %1711 = vst [vmem:[#allocation2 + $0x3d8] sm:$0xf0] %v1687
        %1712 = vst [vmem:[#allocation2 + $0x3e0] sm:$0xf0] %v1688
        %1713 = vst [vmem:[#allocation2 + $0x3e8] sm:$0xf0] %v1689
        %1714 = vst [vmem:[#allocation2 + $0x3f0] sm:$0xf0] %v1690
        %1715 = vst [vmem:[#allocation2 + $0x3f8] sm:$0xf0] %v1691
        %1716 = vst [vmem:[#allocation2 + $0x400] sm:$0xf0] %v1692
        %1717 = vst [vmem:[#allocation2 + $0x408] sm:$0xf0] %v1693
        %1718 = vst [vmem:[#allocation2 + $0x410] sm:$0xf0] %v1694
        %1719 = vst [vmem:[#allocation2 + $0x418] sm:$0xf0] %v1695
        %1720 = vrot.lane.b32.xlu0 %v336, 101
        %v1721 = vpop.permute.xlu0 %1720
        %1722 = vrot.lane.b32.xlu0 %v337, 101
        %v1723 = vpop.permute.xlu0 %1722
        %1724 = vrot.lane.b32.xlu0 %v338, 101
        %v1725 = vpop.permute.xlu0 %1724
        %1726 = vrot.lane.b32.xlu0 %v339, 101
        %v1727 = vpop.permute.xlu0 %1726
        %1728 = vrot.lane.b32.xlu0 %v340, 101
        %v1729 = vpop.permute.xlu0 %1728
        %1730 = vrot.lane.b32.xlu0 %v341, 101
        %v1731 = vpop.permute.xlu0 %1730
        %1732 = vrot.lane.b32.xlu0 %v342, 101
        %v1733 = vpop.permute.xlu0 %1732
        %1734 = vrot.lane.b32.xlu0 %v343, 101
        %v1735 = vpop.permute.xlu0 %1734
        %1736 = vrot.lane.b32.xlu0 %v344, 101
        %v1737 = vpop.permute.xlu0 %1736
        %1738 = vrot.lane.b32.xlu0 %v345, 101
        %v1739 = vpop.permute.xlu0 %1738
        %1740 = vrot.lane.b32.xlu0 %v346, 101
        %v1741 = vpop.permute.xlu0 %1740
        %1742 = vrot.lane.b32.xlu0 %v347, 101
        %v1743 = vpop.permute.xlu0 %1742
        %1744 = vrot.lane.b32.xlu0 %v348, 101
        %v1745 = vpop.permute.xlu0 %1744
        %vm1746 = vcmask 826368
        %v1747 = vsel %vm1746, %v1721, %v1723
        %v1748 = vsel %vm1746, %v1723, %v1725
        %v1749 = vsel %vm1746, %v1725, %v1727
        %v1750 = vsel %vm1746, %v1727, %v1729
        %v1751 = vsel %vm1746, %v1729, %v1731
        %v1752 = vsel %vm1746, %v1731, %v1733
        %v1753 = vsel %vm1746, %v1733, %v1735
        %v1754 = vsel %vm1746, %v1735, %v1737
        %v1755 = vsel %vm1746, %v1737, %v1739
        %v1756 = vsel %vm1746, %v1739, %v1741
        %v1757 = vsel %vm1746, %v1741, %v1743
        %v1758 = vsel %vm1746, %v1743, %v1745
        %1771 = vst [vmem:[#allocation2 + $0x420] sm:$0xf] %v1747
        %1772 = vst [vmem:[#allocation2 + $0x428] sm:$0xf] %v1748
        %1773 = vst [vmem:[#allocation2 + $0x430] sm:$0xf] %v1749
        %1774 = vst [vmem:[#allocation2 + $0x438] sm:$0xf] %v1750
        %1775 = vst [vmem:[#allocation2 + $0x440] sm:$0xf] %v1751
        %1776 = vst [vmem:[#allocation2 + $0x448] sm:$0xf] %v1752
        %1777 = vst [vmem:[#allocation2 + $0x450] sm:$0xf] %v1753
        %1778 = vst [vmem:[#allocation2 + $0x458] sm:$0xf] %v1754
        %1779 = vst [vmem:[#allocation2 + $0x460] sm:$0xf] %v1755
        %1780 = vst [vmem:[#allocation2 + $0x468] sm:$0xf] %v1756
        %1781 = vst [vmem:[#allocation2 + $0x470] sm:$0xf] %v1757
        %1782 = vst [vmem:[#allocation2 + $0x478] sm:$0xf] %v1758
        %1783 = vrot.lane.b32.xlu0 %v379, 100
        %v1784 = vpop.permute.xlu0 %1783
        %1785 = vrot.lane.b32.xlu0 %v380, 100
        %v1786 = vpop.permute.xlu0 %1785
        %1787 = vrot.lane.b32.xlu0 %v381, 100
        %v1788 = vpop.permute.xlu0 %1787
        %1789 = vrot.lane.b32.xlu0 %v382, 100
        %v1790 = vpop.permute.xlu0 %1789
        %1791 = vrot.lane.b32.xlu0 %v383, 100
        %v1792 = vpop.permute.xlu0 %1791
        %1793 = vrot.lane.b32.xlu0 %v384, 100
        %v1794 = vpop.permute.xlu0 %1793
        %1795 = vrot.lane.b32.xlu0 %v385, 100
        %v1796 = vpop.permute.xlu0 %1795
        %1797 = vrot.lane.b32.xlu0 %v386, 100
        %v1798 = vpop.permute.xlu0 %1797
        %1799 = vrot.lane.b32.xlu0 %v893, 100
        %v1800 = vpop.permute.xlu0 %1799
        %1801 = vrot.lane.b32.xlu0 %v894, 100
        %v1802 = vpop.permute.xlu0 %1801
        %1803 = vrot.lane.b32.xlu0 %v1528, 100
        %v1804 = vpop.permute.xlu0 %1803
        %1805 = vrot.lane.b32.xlu0 %v1529, 100
        %v1806 = vpop.permute.xlu0 %1805
        %1807 = vrot.lane.b32.xlu0 %v1530, 100
        %v1808 = vpop.permute.xlu0 %1807
        %vm1809 = vcmask 818176
        %v1810 = vsel %vm1809, %v1784, %v1786
        %v1811 = vsel %vm1809, %v1786, %v1788
        %v1812 = vsel %vm1809, %v1788, %v1790
        %v1813 = vsel %vm1809, %v1790, %v1792
        %v1814 = vsel %vm1809, %v1792, %v1794
        %v1815 = vsel %vm1809, %v1794, %v1796
        %v1816 = vsel %vm1809, %v1796, %v1798
        %v1817 = vsel %vm1809, %v1798, %v1800
        %v1818 = vsel %vm1809, %v1800, %v1802
        %v1819 = vsel %vm1809, %v1802, %v1804
        %v1820 = vsel %vm1809, %v1804, %v1806
        %v1821 = vsel %vm1809, %v1806, %v1808
        %1834 = vst [vmem:[#allocation2 + $0x420] sm:$0xf0] %v1810
        %1835 = vst [vmem:[#allocation2 + $0x428] sm:$0xf0] %v1811
        %1836 = vst [vmem:[#allocation2 + $0x430] sm:$0xf0] %v1812
        %1837 = vst [vmem:[#allocation2 + $0x438] sm:$0xf0] %v1813
        %1838 = vst [vmem:[#allocation2 + $0x440] sm:$0xf0] %v1814
        %1839 = vst [vmem:[#allocation2 + $0x448] sm:$0xf0] %v1815
        %1840 = vst [vmem:[#allocation2 + $0x450] sm:$0xf0] %v1816
        %1841 = vst [vmem:[#allocation2 + $0x458] sm:$0xf0] %v1817
        %1842 = vst [vmem:[#allocation2 + $0x460] sm:$0xf0] %v1818
        %1843 = vst [vmem:[#allocation2 + $0x468] sm:$0xf0] %v1819
        %1844 = vst [vmem:[#allocation2 + $0x470] sm:$0xf0] %v1820
        %1845 = vst [vmem:[#allocation2 + $0x478] sm:$0xf0] %v1821
        %1846 = vrot.lane.b32.xlu0 %v336, 84
        %v1847 = vpop.permute.xlu0 %1846
        %1848 = vrot.lane.b32.xlu0 %v337, 84
        %v1849 = vpop.permute.xlu0 %1848
        %1850 = vrot.lane.b32.xlu0 %v338, 84
        %v1851 = vpop.permute.xlu0 %1850
        %1852 = vrot.lane.b32.xlu0 %v339, 84
        %v1853 = vpop.permute.xlu0 %1852
        %1854 = vrot.lane.b32.xlu0 %v340, 84
        %v1855 = vpop.permute.xlu0 %1854
        %1856 = vrot.lane.b32.xlu0 %v341, 84
        %v1857 = vpop.permute.xlu0 %1856
        %1858 = vrot.lane.b32.xlu0 %v342, 84
        %v1859 = vpop.permute.xlu0 %1858
        %1860 = vrot.lane.b32.xlu0 %v343, 84
        %v1861 = vpop.permute.xlu0 %1860
        %1862 = vrot.lane.b32.xlu0 %v344, 84
        %v1863 = vpop.permute.xlu0 %1862
        %1864 = vrot.lane.b32.xlu0 %v345, 84
        %v1865 = vpop.permute.xlu0 %1864
        %1866 = vrot.lane.b32.xlu0 %v346, 84
        %v1867 = vpop.permute.xlu0 %1866
        %1868 = vrot.lane.b32.xlu0 %v347, 84
        %v1869 = vpop.permute.xlu0 %1868
        %1870 = vrot.lane.b32.xlu0 %v348, 84
        %v1871 = vpop.permute.xlu0 %1870
        %vm1872 = vcmask 687104
        %v1873 = vsel %vm1872, %v1847, %v1849
        %v1874 = vsel %vm1872, %v1849, %v1851
        %v1875 = vsel %vm1872, %v1851, %v1853
        %v1876 = vsel %vm1872, %v1853, %v1855
        %v1877 = vsel %vm1872, %v1855, %v1857
        %v1878 = vsel %vm1872, %v1857, %v1859
        %v1879 = vsel %vm1872, %v1859, %v1861
        %v1880 = vsel %vm1872, %v1861, %v1863
        %v1881 = vsel %vm1872, %v1863, %v1865
        %v1882 = vsel %vm1872, %v1865, %v1867
        %v1883 = vsel %vm1872, %v1867, %v1869
        %v1884 = vsel %vm1872, %v1869, %v1871
        %1897 = vst [vmem:[#allocation2 + $0x480] sm:$0xf] %v1873
        %1898 = vst [vmem:[#allocation2 + $0x488] sm:$0xf] %v1874
        %1899 = vst [vmem:[#allocation2 + $0x490] sm:$0xf] %v1875
        %1900 = vst [vmem:[#allocation2 + $0x498] sm:$0xf] %v1876
        %1901 = vst [vmem:[#allocation2 + $0x4a0] sm:$0xf] %v1877
        %1902 = vst [vmem:[#allocation2 + $0x4a8] sm:$0xf] %v1878
        %1903 = vst [vmem:[#allocation2 + $0x4b0] sm:$0xf] %v1879
        %1904 = vst [vmem:[#allocation2 + $0x4b8] sm:$0xf] %v1880
        %1905 = vst [vmem:[#allocation2 + $0x4c0] sm:$0xf] %v1881
        %1906 = vst [vmem:[#allocation2 + $0x4c8] sm:$0xf] %v1882
        %1907 = vst [vmem:[#allocation2 + $0x4d0] sm:$0xf] %v1883
        %1908 = vst [vmem:[#allocation2 + $0x4d8] sm:$0xf] %v1884
        %1909 = vrot.lane.b32.xlu0 %v379, 83
        %v1910 = vpop.permute.xlu0 %1909
        %1911 = vrot.lane.b32.xlu0 %v380, 83
        %v1912 = vpop.permute.xlu0 %1911
        %1913 = vrot.lane.b32.xlu0 %v381, 83
        %v1914 = vpop.permute.xlu0 %1913
        %1915 = vrot.lane.b32.xlu0 %v382, 83
        %v1916 = vpop.permute.xlu0 %1915
        %1917 = vrot.lane.b32.xlu0 %v383, 83
        %v1918 = vpop.permute.xlu0 %1917
        %1919 = vrot.lane.b32.xlu0 %v384, 83
        %v1920 = vpop.permute.xlu0 %1919
        %1921 = vrot.lane.b32.xlu0 %v385, 83
        %v1922 = vpop.permute.xlu0 %1921
        %1923 = vrot.lane.b32.xlu0 %v386, 83
        %v1924 = vpop.permute.xlu0 %1923
        %1925 = vrot.lane.b32.xlu0 %v893, 83
        %v1926 = vpop.permute.xlu0 %1925
        %1927 = vrot.lane.b32.xlu0 %v894, 83
        %v1928 = vpop.permute.xlu0 %1927
        %1929 = vrot.lane.b32.xlu0 %v1528, 83
        %v1930 = vpop.permute.xlu0 %1929
        %1931 = vrot.lane.b32.xlu0 %v1529, 83
        %v1932 = vpop.permute.xlu0 %1931
        %1933 = vrot.lane.b32.xlu0 %v1530, 83
        %v1934 = vpop.permute.xlu0 %1933
        %vm1935 = vcmask 678912
        %v1936 = vsel %vm1935, %v1910, %v1912
        %v1937 = vsel %vm1935, %v1912, %v1914
        %v1938 = vsel %vm1935, %v1914, %v1916
        %v1939 = vsel %vm1935, %v1916, %v1918
        %v1940 = vsel %vm1935, %v1918, %v1920
        %v1941 = vsel %vm1935, %v1920, %v1922
        %v1942 = vsel %vm1935, %v1922, %v1924
        %v1943 = vsel %vm1935, %v1924, %v1926
        %v1944 = vsel %vm1935, %v1926, %v1928
        %v1945 = vsel %vm1935, %v1928, %v1930
        %v1946 = vsel %vm1935, %v1930, %v1932
        %v1947 = vsel %vm1935, %v1932, %v1934
        %1960 = vst [vmem:[#allocation2 + $0x480] sm:$0xf0] %v1936
        %1961 = vst [vmem:[#allocation2 + $0x488] sm:$0xf0] %v1937
        %1962 = vst [vmem:[#allocation2 + $0x490] sm:$0xf0] %v1938
        %1963 = vst [vmem:[#allocation2 + $0x498] sm:$0xf0] %v1939
        %1964 = vst [vmem:[#allocation2 + $0x4a0] sm:$0xf0] %v1940
        %1965 = vst [vmem:[#allocation2 + $0x4a8] sm:$0xf0] %v1941
        %1966 = vst [vmem:[#allocation2 + $0x4b0] sm:$0xf0] %v1942
        %1967 = vst [vmem:[#allocation2 + $0x4b8] sm:$0xf0] %v1943
        %1968 = vst [vmem:[#allocation2 + $0x4c0] sm:$0xf0] %v1944
        %1969 = vst [vmem:[#allocation2 + $0x4c8] sm:$0xf0] %v1945
        %1970 = vst [vmem:[#allocation2 + $0x4d0] sm:$0xf0] %v1946
        %1971 = vst [vmem:[#allocation2 + $0x4d8] sm:$0xf0] %v1947
        %1972 = vrot.lane.b32.xlu0 %v336, 82
        %v1973 = vpop.permute.xlu0 %1972
        %1974 = vrot.lane.b32.xlu0 %v337, 82
        %v1975 = vpop.permute.xlu0 %1974
        %1976 = vrot.lane.b32.xlu0 %v338, 82
        %v1977 = vpop.permute.xlu0 %1976
        %1978 = vrot.lane.b32.xlu0 %v339, 82
        %v1979 = vpop.permute.xlu0 %1978
        %1980 = vrot.lane.b32.xlu0 %v340, 82
        %v1981 = vpop.permute.xlu0 %1980
        %1982 = vrot.lane.b32.xlu0 %v341, 82
        %v1983 = vpop.permute.xlu0 %1982
        %1984 = vrot.lane.b32.xlu0 %v342, 82
        %v1985 = vpop.permute.xlu0 %1984
        %1986 = vrot.lane.b32.xlu0 %v343, 82
        %v1987 = vpop.permute.xlu0 %1986
        %1988 = vrot.lane.b32.xlu0 %v344, 82
        %v1989 = vpop.permute.xlu0 %1988
        %1990 = vrot.lane.b32.xlu0 %v345, 82
        %v1991 = vpop.permute.xlu0 %1990
        %1992 = vrot.lane.b32.xlu0 %v346, 82
        %v1993 = vpop.permute.xlu0 %1992
        %1994 = vrot.lane.b32.xlu0 %v347, 82
        %v1995 = vpop.permute.xlu0 %1994
        %1996 = vrot.lane.b32.xlu0 %v348, 82
        %v1997 = vpop.permute.xlu0 %1996
        %vm1998 = vcmask 670720
        %v1999 = vsel %vm1998, %v1973, %v1975
        %v2000 = vsel %vm1998, %v1975, %v1977
        %v2001 = vsel %vm1998, %v1977, %v1979
        %v2002 = vsel %vm1998, %v1979, %v1981
        %v2003 = vsel %vm1998, %v1981, %v1983
        %v2004 = vsel %vm1998, %v1983, %v1985
        %v2005 = vsel %vm1998, %v1985, %v1987
        %v2006 = vsel %vm1998, %v1987, %v1989
        %v2007 = vsel %vm1998, %v1989, %v1991
        %v2008 = vsel %vm1998, %v1991, %v1993
        %v2009 = vsel %vm1998, %v1993, %v1995
        %v2010 = vsel %vm1998, %v1995, %v1997
        %2023 = vst [vmem:[#allocation2 + $0x4e0] sm:$0xf] %v1999
        %2024 = vst [vmem:[#allocation2 + $0x4e8] sm:$0xf] %v2000
        %2025 = vst [vmem:[#allocation2 + $0x4f0] sm:$0xf] %v2001
        %2026 = vst [vmem:[#allocation2 + $0x4f8] sm:$0xf] %v2002
        %2027 = vst [vmem:[#allocation2 + $0x500] sm:$0xf] %v2003
        %2028 = vst [vmem:[#allocation2 + $0x508] sm:$0xf] %v2004
        %2029 = vst [vmem:[#allocation2 + $0x510] sm:$0xf] %v2005
        %2030 = vst [vmem:[#allocation2 + $0x518] sm:$0xf] %v2006
        %2031 = vst [vmem:[#allocation2 + $0x520] sm:$0xf] %v2007
        %2032 = vst [vmem:[#allocation2 + $0x528] sm:$0xf] %v2008
        %2033 = vst [vmem:[#allocation2 + $0x530] sm:$0xf] %v2009
        %2034 = vst [vmem:[#allocation2 + $0x538] sm:$0xf] %v2010
        %v2035 = vld [vmem:[%s2] sm:$0xff]
        %v2036 = vld [vmem:[#allocation2] sm:$0xff]
        %v2037 = vld [vmem:[#allocation2 + $0x8] sm:$0xff]
        %v2038 = vld [vmem:[#allocation2 + $0x10] sm:$0xff]
        %v2039 = vld [vmem:[#allocation2 + $0x18] sm:$0xff]
        %v2040 = vld [vmem:[#allocation2 + $0x20] sm:$0xff]
        %v2041 = vld [vmem:[#allocation2 + $0x28] sm:$0xff]
        %v2042 = vld [vmem:[#allocation2 + $0x30] sm:$0xff]
        %v2043 = vld [vmem:[#allocation2 + $0x38] sm:$0xff]
        %v2044 = vld [vmem:[#allocation2 + $0x40] sm:$0xff]
        %v2045 = vld [vmem:[#allocation2 + $0x48] sm:$0xff]
        %v2046 = vld [vmem:[#allocation2 + $0x50] sm:$0xff]
        %v2047 = vld [vmem:[#allocation2 + $0x58] sm:$0xff]
        %v2048 = vld [vmem:[#allocation2 + $0x60] sm:$0xff]
        %v2049 = vld [vmem:[#allocation2 + $0x68] sm:$0xff]
        %v2050 = vld [vmem:[#allocation2 + $0x70] sm:$0xff]
        %v2051 = vld [vmem:[#allocation2 + $0x78] sm:$0xff]
        %v2052 = vld [vmem:[#allocation2 + $0x80] sm:$0xff]
        %v2053 = vld [vmem:[#allocation2 + $0x88] sm:$0xff]
        %v2054 = vld [vmem:[#allocation2 + $0x90] sm:$0xff]
        %v2055 = vld [vmem:[#allocation2 + $0x98] sm:$0xff]
        %v2056 = vld [vmem:[#allocation2 + $0xa0] sm:$0xff]
        %v2057 = vld [vmem:[#allocation2 + $0xa8] sm:$0xff]
        %v2058 = vld [vmem:[#allocation2 + $0xb0] sm:$0xff]
        %v2059 = vld [vmem:[#allocation2 + $0xb8] sm:$0xff]
        %v2060 = vld [vmem:[#allocation2 + $0xc0] sm:$0xff]
        %v2061 = vld [vmem:[#allocation2 + $0xc8] sm:$0xff]
        %v2062 = vld [vmem:[#allocation2 + $0xd0] sm:$0xff]
        %v2063 = vld [vmem:[#allocation2 + $0xd8] sm:$0xff]
        %v2064 = vld [vmem:[#allocation2 + $0xe0] sm:$0xff]
        %v2065 = vld [vmem:[#allocation2 + $0xe8] sm:$0xff]
        %v2066 = vld [vmem:[#allocation2 + $0xf0] sm:$0xff]
        %v2067 = vld [vmem:[#allocation2 + $0xf8] sm:$0xff]
        %v2068 = vld [vmem:[#allocation2 + $0x100] sm:$0xff]
        %v2069 = vld [vmem:[#allocation2 + $0x108] sm:$0xff]
        %v2070 = vld [vmem:[#allocation2 + $0x110] sm:$0xff]
        %v2071 = vld [vmem:[#allocation2 + $0x118] sm:$0xff]
        %v2072 = vld [vmem:[#allocation2 + $0x120] sm:$0xff]
        %v2073 = vld [vmem:[#allocation2 + $0x128] sm:$0xff]
        %v2074 = vld [vmem:[#allocation2 + $0x130] sm:$0xff]
        %v2075 = vld [vmem:[#allocation2 + $0x138] sm:$0xff]
        %v2076 = vld [vmem:[#allocation2 + $0x140] sm:$0xff]
        %v2077 = vld [vmem:[#allocation2 + $0x148] sm:$0xff]
        %v2078 = vld [vmem:[#allocation2 + $0x150] sm:$0xff]
        %v2079 = vld [vmem:[#allocation2 + $0x158] sm:$0xff]
        %v2080 = vld [vmem:[#allocation2 + $0x160] sm:$0xff]
        %v2081 = vld [vmem:[#allocation2 + $0x168] sm:$0xff]
        %v2082 = vld [vmem:[#allocation2 + $0x170] sm:$0xff]
        %v2083 = vld [vmem:[#allocation2 + $0x178] sm:$0xff]
        %v2084 = vld [vmem:[#allocation2 + $0x180] sm:$0xff]
        %v2085 = vld [vmem:[#allocation2 + $0x188] sm:$0xff]
        %v2086 = vld [vmem:[#allocation2 + $0x190] sm:$0xff]
        %v2087 = vld [vmem:[#allocation2 + $0x198] sm:$0xff]
        %v2088 = vld [vmem:[#allocation2 + $0x1a0] sm:$0xff]
        %v2089 = vld [vmem:[#allocation2 + $0x1a8] sm:$0xff]
        %v2090 = vld [vmem:[#allocation2 + $0x1b0] sm:$0xff]
        %v2091 = vld [vmem:[#allocation2 + $0x1b8] sm:$0xff]
        %v2092 = vld [vmem:[#allocation2 + $0x1c0] sm:$0xff]
        %v2093 = vld [vmem:[#allocation2 + $0x1c8] sm:$0xff]
        %v2094 = vld [vmem:[#allocation2 + $0x1d0] sm:$0xff]
        %v2095 = vld [vmem:[#allocation2 + $0x1d8] sm:$0xff]
        %v2096 = vld [vmem:[#allocation2 + $0x1e0] sm:$0xff]
        %v2097 = vld [vmem:[#allocation2 + $0x1e8] sm:$0xff]
        %v2098 = vld [vmem:[#allocation2 + $0x1f0] sm:$0xff]
        %v2099 = vld [vmem:[#allocation2 + $0x1f8] sm:$0xff]
        %v2100 = vld [vmem:[#allocation2 + $0x200] sm:$0xff]
        %v2101 = vld [vmem:[#allocation2 + $0x208] sm:$0xff]
        %v2102 = vld [vmem:[#allocation2 + $0x210] sm:$0xff]
        %v2103 = vld [vmem:[#allocation2 + $0x218] sm:$0xff]
        %v2104 = vld [vmem:[#allocation2 + $0x220] sm:$0xff]
        %v2105 = vld [vmem:[#allocation2 + $0x228] sm:$0xff]
        %v2106 = vld [vmem:[#allocation2 + $0x230] sm:$0xff]
        %v2107 = vld [vmem:[#allocation2 + $0x238] sm:$0xff]
        %v2108 = vld [vmem:[#allocation2 + $0x240] sm:$0xff]
        %v2109 = vld [vmem:[#allocation2 + $0x248] sm:$0xff]
        %v2110 = vld [vmem:[#allocation2 + $0x250] sm:$0xff]
        %v2111 = vld [vmem:[#allocation2 + $0x258] sm:$0xff]
        %v2112 = vld [vmem:[#allocation2 + $0x260] sm:$0xff]
        %v2113 = vld [vmem:[#allocation2 + $0x268] sm:$0xff]
        %v2114 = vld [vmem:[#allocation2 + $0x270] sm:$0xff]
        %v2115 = vld [vmem:[#allocation2 + $0x278] sm:$0xff]
        %v2116 = vld [vmem:[#allocation2 + $0x280] sm:$0xff]
        %v2117 = vld [vmem:[#allocation2 + $0x288] sm:$0xff]
        %v2118 = vld [vmem:[#allocation2 + $0x290] sm:$0xff]
        %v2119 = vld [vmem:[#allocation2 + $0x298] sm:$0xff]
        %v2120 = vld [vmem:[#allocation2 + $0x2a0] sm:$0xff]
        %v2121 = vld [vmem:[#allocation2 + $0x2a8] sm:$0xff]
        %v2122 = vld [vmem:[#allocation2 + $0x2b0] sm:$0xff]
        %v2123 = vld [vmem:[#allocation2 + $0x2b8] sm:$0xff]
        %v2124 = vld [vmem:[#allocation2 + $0x2c0] sm:$0xff]
        %v2125 = vld [vmem:[#allocation2 + $0x2c8] sm:$0xff]
        %v2126 = vld [vmem:[#allocation2 + $0x2d0] sm:$0xff]
        %v2127 = vld [vmem:[#allocation2 + $0x2d8] sm:$0xff]
        %v2128 = vld [vmem:[#allocation2 + $0x2e0] sm:$0xff]
        %v2129 = vld [vmem:[#allocation2 + $0x2e8] sm:$0xff]
        %v2130 = vld [vmem:[#allocation2 + $0x2f0] sm:$0xff]
        %v2131 = vld [vmem:[#allocation2 + $0x2f8] sm:$0xff]
        %v2132 = vld [vmem:[#allocation2 + $0x300] sm:$0xff]
        %v2133 = vld [vmem:[#allocation2 + $0x308] sm:$0xff]
        %v2134 = vld [vmem:[#allocation2 + $0x310] sm:$0xff]
        %v2135 = vld [vmem:[#allocation2 + $0x318] sm:$0xff]
        %v2136 = vld [vmem:[#allocation2 + $0x320] sm:$0xff]
        %v2137 = vld [vmem:[#allocation2 + $0x328] sm:$0xff]
        %v2138 = vld [vmem:[#allocation2 + $0x330] sm:$0xff]
        %v2139 = vld [vmem:[#allocation2 + $0x338] sm:$0xff]
        %v2140 = vld [vmem:[#allocation2 + $0x340] sm:$0xff]
        %v2141 = vld [vmem:[#allocation2 + $0x348] sm:$0xff]
        %v2142 = vld [vmem:[#allocation2 + $0x350] sm:$0xff]
        %v2143 = vld [vmem:[#allocation2 + $0x358] sm:$0xff]
        %v2144 = vld [vmem:[#allocation2 + $0x360] sm:$0xff]
        %v2145 = vld [vmem:[#allocation2 + $0x368] sm:$0xff]
        %v2146 = vld [vmem:[#allocation2 + $0x370] sm:$0xff]
        %v2147 = vld [vmem:[#allocation2 + $0x378] sm:$0xff]
        %v2148 = vld [vmem:[#allocation2 + $0x380] sm:$0xff]
        %v2149 = vld [vmem:[#allocation2 + $0x388] sm:$0xff]
        %v2150 = vld [vmem:[#allocation2 + $0x390] sm:$0xff]
        %v2151 = vld [vmem:[#allocation2 + $0x398] sm:$0xff]
        %v2152 = vld [vmem:[#allocation2 + $0x3a0] sm:$0xff]
        %v2153 = vld [vmem:[#allocation2 + $0x3a8] sm:$0xff]
        %v2154 = vld [vmem:[#allocation2 + $0x3b0] sm:$0xff]
        %v2155 = vld [vmem:[#allocation2 + $0x3b8] sm:$0xff]
        %v2156 = vld [vmem:[#allocation2 + $0x3c0] sm:$0xff]
        %v2157 = vld [vmem:[#allocation2 + $0x3c8] sm:$0xff]
        %v2158 = vld [vmem:[#allocation2 + $0x3d0] sm:$0xff]
        %v2159 = vld [vmem:[#allocation2 + $0x3d8] sm:$0xff]
        %v2160 = vld [vmem:[#allocation2 + $0x3e0] sm:$0xff]
        %v2161 = vld [vmem:[#allocation2 + $0x3e8] sm:$0xff]
        %v2162 = vld [vmem:[#allocation2 + $0x3f0] sm:$0xff]
        %v2163 = vld [vmem:[#allocation2 + $0x3f8] sm:$0xff]
        %v2164 = vld [vmem:[#allocation2 + $0x400] sm:$0xff]
        %v2165 = vld [vmem:[#allocation2 + $0x408] sm:$0xff]
        %v2166 = vld [vmem:[#allocation2 + $0x410] sm:$0xff]
        %v2167 = vld [vmem:[#allocation2 + $0x418] sm:$0xff]
        %v2168 = vld [vmem:[#allocation2 + $0x420] sm:$0xff]
        %v2169 = vld [vmem:[#allocation2 + $0x428] sm:$0xff]
        %v2170 = vld [vmem:[#allocation2 + $0x430] sm:$0xff]
        %v2171 = vld [vmem:[#allocation2 + $0x438] sm:$0xff]
        %v2172 = vld [vmem:[#allocation2 + $0x440] sm:$0xff]
        %v2173 = vld [vmem:[#allocation2 + $0x448] sm:$0xff]
        %v2174 = vld [vmem:[#allocation2 + $0x450] sm:$0xff]
        %v2175 = vld [vmem:[#allocation2 + $0x458] sm:$0xff]
        %v2176 = vld [vmem:[#allocation2 + $0x460] sm:$0xff]
        %v2177 = vld [vmem:[#allocation2 + $0x468] sm:$0xff]
        %v2178 = vld [vmem:[#allocation2 + $0x470] sm:$0xff]
        %v2179 = vld [vmem:[#allocation2 + $0x478] sm:$0xff]
        %v2180 = vld [vmem:[#allocation2 + $0x480] sm:$0xff]
        %v2181 = vld [vmem:[#allocation2 + $0x488] sm:$0xff]
        %v2182 = vld [vmem:[#allocation2 + $0x490] sm:$0xff]
        %v2183 = vld [vmem:[#allocation2 + $0x498] sm:$0xff]
        %v2184 = vld [vmem:[#allocation2 + $0x4a0] sm:$0xff]
        %v2185 = vld [vmem:[#allocation2 + $0x4a8] sm:$0xff]
        %v2186 = vld [vmem:[#allocation2 + $0x4b0] sm:$0xff]
        %v2187 = vld [vmem:[#allocation2 + $0x4b8] sm:$0xff]
        %v2188 = vld [vmem:[#allocation2 + $0x4c0] sm:$0xff]
        %v2189 = vld [vmem:[#allocation2 + $0x4c8] sm:$0xff]
        %v2190 = vld [vmem:[#allocation2 + $0x4d0] sm:$0xff]
        %v2191 = vld [vmem:[#allocation2 + $0x4d8] sm:$0xff]
        %v2192 = vld [vmem:[#allocation2 + $0x4e0] sm:$0xf]
        %v2193 = vld [vmem:[#allocation2 + $0x4e8] sm:$0xf]
        %v2194 = vld [vmem:[#allocation2 + $0x4f0] sm:$0xf]
        %v2195 = vld [vmem:[#allocation2 + $0x4f8] sm:$0xf]
        %v2196 = vld [vmem:[#allocation2 + $0x500] sm:$0xf]
        %v2197 = vld [vmem:[#allocation2 + $0x508] sm:$0xf]
        %v2198 = vld [vmem:[#allocation2 + $0x510] sm:$0xf]
        %v2199 = vld [vmem:[#allocation2 + $0x518] sm:$0xf]
        %v2200 = vld [vmem:[#allocation2 + $0x520] sm:$0xf]
        %v2201 = vld [vmem:[#allocation2 + $0x528] sm:$0xf]
        %v2202 = vld [vmem:[#allocation2 + $0x530] sm:$0xf]
        %v2203 = vld [vmem:[#allocation2 + $0x538] sm:$0xf]
        %v2204 = vld [vmem:[%s3] sm:$0xff]
        %2206 = vset.pattern.permute.xlu0 0
        %2207 = vperm.xlu0 %2206, %v2204
        %v2208 = vpop.permute.xlu0 %2207
        %v2211 = vsel %vm665, %v2035, 0
        %vm2213 = vcmask 1043456
        %v2215 = vsel %vm2213, %v2192, 0
        %v2218 = vsel %vm2213, %v2193, 0
        %v2221 = vsel %vm2213, %v2194, 0
        %v2224 = vsel %vm2213, %v2195, 0
        %v2227 = vsel %vm2213, %v2196, 0
        %v2230 = vsel %vm2213, %v2197, 0
        %v2233 = vsel %vm2213, %v2198, 0
        %v2236 = vsel %vm2213, %v2199, 0
        %v2239 = vsel %vm2213, %v2200, 0
        %v2242 = vsel %vm2213, %v2201, 0
        %v2245 = vsel %vm2213, %v2202, 0
        %v2248 = vsel %vm2213, %v2203, 0
        %2250 = vmatprep.subr.mxu0 0.0
        %2251 = vmatpush1.msra.mxu0 0.0
        %2252 = vmatprep.subr.mxu0 0.0
        %2253 = vmatpush1.msra.mxu0 0.0
        %2254 = vmatprep.subr.mxu0 %v2218
        %2255 = vmatpush1.msra.mxu0 %v2215
        %2256 = vmatprep.subr.mxu0 %v2181
        %2257 = vmatpush1.msra.mxu0 %v2180
        %2258 = vmatprep.subr.mxu0 %v2169
        %2259 = vmatpush1.msra.mxu0 %v2168
        %2260 = vmatprep.subr.mxu0 %v2157
        %2261 = vmatpush1.msra.mxu0 %v2156
        %2262 = vmatprep.subr.mxu0 %v2145
        %2263 = vmatpush1.msra.mxu0 %v2144
        %2264 = vmatprep.subr.mxu0 %v2133
        %2265 = vmatpush1.msra.mxu0 %v2132
        %2266 = vmatprep.subr.mxu0 %v2121
        %2267 = vmatpush1.msra.mxu0 %v2120
        %2268 = vmatprep.subr.mxu0 %v2109
        %2269 = vmatpush1.msra.mxu0 %v2108
        %2270 = vmatprep.subr.mxu0 %v2097
        %2271 = vmatpush1.msra.mxu0 %v2096
        %2272 = vmatprep.subr.mxu0 %v2085
        %2273 = vmatpush1.msra.mxu0 %v2084
        %2274 = vmatprep.subr.mxu0 %v2073
        %2275 = vmatpush1.msra.mxu0 %v2072
        %2276 = vmatprep.subr.mxu0 %v2061
        %2277 = vmatpush1.msra.mxu0 %v2060
        %2278 = vmatprep.subr.mxu0 %v2049
        %2279 = vmatpush1.msra.mxu0 %v2048
        %2280 = vmatprep.subr.mxu0 %v2037
        %2281 = vmatpush1.msra.mxu0 %v2036
        %2282 = vmatprep.subr.mxu0 0.0
        %2283 = vmatpush2.msra.mxu0 0.0
        %2284 = vmatprep.subr.mxu0 0.0
        %2285 = vmatpush2.msra.mxu0 0.0
        %2286 = vmatprep.subr.mxu0 0.0
        %2287 = vmatpush2.msra.mxu0 0.0
        %2288 = vmatprep.subr.mxu0 0.0
        %2289 = vmatpush2.msra.mxu0 0.0
        %2290 = vmatprep.subr.mxu0 0.0
        %2291 = vmatpush2.msra.mxu0 0.0
        %2292 = vmatprep.subr.mxu0 0.0
        %2293 = vmatpush2.msra.mxu0 0.0
        %2294 = vmatprep.subr.mxu0 0.0
        %2295 = vmatpush2.msra.mxu0 0.0
        %2296 = vmatprep.subr.mxu0 0.0
        %2297 = vmatpush2.msra.mxu0 0.0
        %2298 = vmatprep.subr.mxu0 0.0
        %2299 = vmatpush2.msra.mxu0 0.0
        %2300 = vmatprep.subr.mxu0 0.0
        %2301 = vmatpush2.msra.mxu0 0.0
        %2302 = vmatprep.subr.mxu0 0.0
        %2303 = vmatpush2.msra.mxu0 0.0
        %2304 = vmatprep.subr.mxu0 0.0
        %2305 = vmatpush2.msra.mxu0 0.0
        %2306 = vmatprep.subr.mxu0 0.0
        %2307 = vmatpush2.msra.mxu0 0.0
        %2308 = vmatprep.subr.mxu0 0.0
        %2309 = vmatpush2.msra.mxu0 0.0
        %2310 = vmatprep.subr.mxu0 0.0
        %2311 = vmatpush2.msra.mxu0 0.0
        %2312 = vmatprep.subr.mxu0 0.0
        %2313 = vmatpush2.msra.mxu0 0.0
        %2314 = vmatprep.mubr.f32.mxu0 0.0
        %2315 = vmatmul.mubr.f32.gmra.mxu0 %v2211
        %v2316 = vpop.f32.mrf.mxu0
        %v2317 = vadd.f32 %v2208, %v2316
        %v2318 = vpop.f32.mrf.mxu0
        %v2319 = vadd.f32 %v2208, %v2318
        %2320 = vdwg.mxu0
        %2321 = vmatprep.subr.mxu0 0.0
        %2322 = vmatpush1.msra.mxu0 0.0
        %2323 = vmatprep.subr.mxu0 0.0
        %2324 = vmatpush1.msra.mxu0 0.0
        %2325 = vmatprep.subr.mxu0 %v2224
        %2326 = vmatpush1.msra.mxu0 %v2221
        %2327 = vmatprep.subr.mxu0 %v2183
        %2328 = vmatpush1.msra.mxu0 %v2182
        %2329 = vmatprep.subr.mxu0 %v2171
        %2330 = vmatpush1.msra.mxu0 %v2170
        %2331 = vmatprep.subr.mxu0 %v2159
        %2332 = vmatpush1.msra.mxu0 %v2158
        %2333 = vmatprep.subr.mxu0 %v2147
        %2334 = vmatpush1.msra.mxu0 %v2146
        %2335 = vmatprep.subr.mxu0 %v2135
        %2336 = vmatpush1.msra.mxu0 %v2134
        %2337 = vmatprep.subr.mxu0 %v2123
        %2338 = vmatpush1.msra.mxu0 %v2122
        %2339 = vmatprep.subr.mxu0 %v2111
        %2340 = vmatpush1.msra.mxu0 %v2110
        %2341 = vmatprep.subr.mxu0 %v2099
        %2342 = vmatpush1.msra.mxu0 %v2098
        %2343 = vmatprep.subr.mxu0 %v2087
        %2344 = vmatpush1.msra.mxu0 %v2086
        %2345 = vmatprep.subr.mxu0 %v2075
        %2346 = vmatpush1.msra.mxu0 %v2074
        %2347 = vmatprep.subr.mxu0 %v2063
        %2348 = vmatpush1.msra.mxu0 %v2062
        %2349 = vmatprep.subr.mxu0 %v2051
        %2350 = vmatpush1.msra.mxu0 %v2050
        %2351 = vmatprep.subr.mxu0 %v2039
        %2352 = vmatpush1.msra.mxu0 %v2038
        %2353 = vmatprep.subr.mxu0 0.0
        %2354 = vmatpush2.msra.mxu0 0.0
        %2355 = vmatprep.subr.mxu0 0.0
        %2356 = vmatpush2.msra.mxu0 0.0
        %2357 = vmatprep.subr.mxu0 0.0
        %2358 = vmatpush2.msra.mxu0 0.0
        %2359 = vmatprep.subr.mxu0 0.0
        %2360 = vmatpush2.msra.mxu0 0.0
        %2361 = vmatprep.subr.mxu0 0.0
        %2362 = vmatpush2.msra.mxu0 0.0
        %2363 = vmatprep.subr.mxu0 0.0
        %2364 = vmatpush2.msra.mxu0 0.0
        %2365 = vmatprep.subr.mxu0 0.0
        %2366 = vmatpush2.msra.mxu0 0.0
        %2367 = vmatprep.subr.mxu0 0.0
        %2368 = vmatpush2.msra.mxu0 0.0
        %2369 = vmatprep.subr.mxu0 0.0
        %2370 = vmatpush2.msra.mxu0 0.0
        %2371 = vmatprep.subr.mxu0 0.0
        %2372 = vmatpush2.msra.mxu0 0.0
        %2373 = vmatprep.subr.mxu0 0.0
        %2374 = vmatpush2.msra.mxu0 0.0
        %2375 = vmatprep.subr.mxu0 0.0
        %2376 = vmatpush2.msra.mxu0 0.0
        %2377 = vmatprep.subr.mxu0 0.0
        %2378 = vmatpush2.msra.mxu0 0.0
        %2379 = vmatprep.subr.mxu0 0.0
        %2380 = vmatpush2.msra.mxu0 0.0
        %2381 = vmatprep.subr.mxu0 0.0
        %2382 = vmatpush2.msra.mxu0 0.0
        %2383 = vmatprep.subr.mxu0 0.0
        %2384 = vmatpush2.msra.mxu0 0.0
        %2385 = vmatprep.mubr.f32.mxu0 0.0
        %2386 = vmatmul.mubr.f32.gmra.mxu0 %v2211
        %v2387 = vpop.f32.mrf.mxu0
        %v2388 = vadd.f32 %v2208, %v2387
        %v2389 = vpop.f32.mrf.mxu0
        %v2390 = vadd.f32 %v2208, %v2389
        %2391 = vdwg.mxu0
        %2392 = vmatprep.subr.mxu0 0.0
        %2393 = vmatpush1.msra.mxu0 0.0
        %2394 = vmatprep.subr.mxu0 0.0
        %2395 = vmatpush1.msra.mxu0 0.0
        %2396 = vmatprep.subr.mxu0 %v2230
        %2397 = vmatpush1.msra.mxu0 %v2227
        %2398 = vmatprep.subr.mxu0 %v2185
        %2399 = vmatpush1.msra.mxu0 %v2184
        %2400 = vmatprep.subr.mxu0 %v2173
        %2401 = vmatpush1.msra.mxu0 %v2172
        %2402 = vmatprep.subr.mxu0 %v2161
        %2403 = vmatpush1.msra.mxu0 %v2160
        %2404 = vmatprep.subr.mxu0 %v2149
        %2405 = vmatpush1.msra.mxu0 %v2148
        %2406 = vmatprep.subr.mxu0 %v2137
        %2407 = vmatpush1.msra.mxu0 %v2136
        %2408 = vmatprep.subr.mxu0 %v2125
        %2409 = vmatpush1.msra.mxu0 %v2124
        %2410 = vmatprep.subr.mxu0 %v2113
        %2411 = vmatpush1.msra.mxu0 %v2112
        %2412 = vmatprep.subr.mxu0 %v2101
        %2413 = vmatpush1.msra.mxu0 %v2100
        %2414 = vmatprep.subr.mxu0 %v2089
        %2415 = vmatpush1.msra.mxu0 %v2088
        %2416 = vmatprep.subr.mxu0 %v2077
        %2417 = vmatpush1.msra.mxu0 %v2076
        %2418 = vmatprep.subr.mxu0 %v2065
        %2419 = vmatpush1.msra.mxu0 %v2064
        %2420 = vmatprep.subr.mxu0 %v2053
        %2421 = vmatpush1.msra.mxu0 %v2052
        %2422 = vmatprep.subr.mxu0 %v2041
        %2423 = vmatpush1.msra.mxu0 %v2040
        %2424 = vmatprep.subr.mxu0 0.0
        %2425 = vmatpush2.msra.mxu0 0.0
        %2426 = vmatprep.subr.mxu0 0.0
        %2427 = vmatpush2.msra.mxu0 0.0
        %2428 = vmatprep.subr.mxu0 0.0
        %2429 = vmatpush2.msra.mxu0 0.0
        %2430 = vmatprep.subr.mxu0 0.0
        %2431 = vmatpush2.msra.mxu0 0.0
        %2432 = vmatprep.subr.mxu0 0.0
        %2433 = vmatpush2.msra.mxu0 0.0
        %2434 = vmatprep.subr.mxu0 0.0
        %2435 = vmatpush2.msra.mxu0 0.0
        %2436 = vmatprep.subr.mxu0 0.0
        %2437 = vmatpush2.msra.mxu0 0.0
        %2438 = vmatprep.subr.mxu0 0.0
        %2439 = vmatpush2.msra.mxu0 0.0
        %2440 = vmatprep.subr.mxu0 0.0
        %2441 = vmatpush2.msra.mxu0 0.0
        %2442 = vmatprep.subr.mxu0 0.0
        %2443 = vmatpush2.msra.mxu0 0.0
        %2444 = vmatprep.subr.mxu0 0.0
        %2445 = vmatpush2.msra.mxu0 0.0
        %2446 = vmatprep.subr.mxu0 0.0
        %2447 = vmatpush2.msra.mxu0 0.0
        %2448 = vmatprep.subr.mxu0 0.0
        %2449 = vmatpush2.msra.mxu0 0.0
        %2450 = vmatprep.subr.mxu0 0.0
        %2451 = vmatpush2.msra.mxu0 0.0
        %2452 = vmatprep.subr.mxu0 0.0
        %2453 = vmatpush2.msra.mxu0 0.0
        %2454 = vmatprep.subr.mxu0 0.0
        %2455 = vmatpush2.msra.mxu0 0.0
        %2456 = vmatprep.mubr.f32.mxu0 0.0
        %2457 = vmatmul.mubr.f32.gmra.mxu0 %v2211
        %v2458 = vpop.f32.mrf.mxu0
        %v2459 = vadd.f32 %v2208, %v2458
        %v2460 = vpop.f32.mrf.mxu0
        %v2461 = vadd.f32 %v2208, %v2460
        %2462 = vdwg.mxu0
        %2463 = vmatprep.subr.mxu0 0.0
        %2464 = vmatpush1.msra.mxu0 0.0
        %2465 = vmatprep.subr.mxu0 0.0
        %2466 = vmatpush1.msra.mxu0 0.0
        %2467 = vmatprep.subr.mxu0 %v2236
        %2468 = vmatpush1.msra.mxu0 %v2233
        %2469 = vmatprep.subr.mxu0 %v2187
        %2470 = vmatpush1.msra.mxu0 %v2186
        %2471 = vmatprep.subr.mxu0 %v2175
        %2472 = vmatpush1.msra.mxu0 %v2174
        %2473 = vmatprep.subr.mxu0 %v2163
        %2474 = vmatpush1.msra.mxu0 %v2162
        %2475 = vmatprep.subr.mxu0 %v2151
        %2476 = vmatpush1.msra.mxu0 %v2150
        %2477 = vmatprep.subr.mxu0 %v2139
        %2478 = vmatpush1.msra.mxu0 %v2138
        %2479 = vmatprep.subr.mxu0 %v2127
        %2480 = vmatpush1.msra.mxu0 %v2126
        %2481 = vmatprep.subr.mxu0 %v2115
        %2482 = vmatpush1.msra.mxu0 %v2114
        %2483 = vmatprep.subr.mxu0 %v2103
        %2484 = vmatpush1.msra.mxu0 %v2102
        %2485 = vmatprep.subr.mxu0 %v2091
        %2486 = vmatpush1.msra.mxu0 %v2090
        %2487 = vmatprep.subr.mxu0 %v2079
        %2488 = vmatpush1.msra.mxu0 %v2078
        %2489 = vmatprep.subr.mxu0 %v2067
        %2490 = vmatpush1.msra.mxu0 %v2066
        %2491 = vmatprep.subr.mxu0 %v2055
        %2492 = vmatpush1.msra.mxu0 %v2054
        %2493 = vmatprep.subr.mxu0 %v2043
        %2494 = vmatpush1.msra.mxu0 %v2042
        %2495 = vmatprep.subr.mxu0 0.0
        %2496 = vmatpush2.msra.mxu0 0.0
        %2497 = vmatprep.subr.mxu0 0.0
        %2498 = vmatpush2.msra.mxu0 0.0
        %2499 = vmatprep.subr.mxu0 0.0
        %2500 = vmatpush2.msra.mxu0 0.0
        %2501 = vmatprep.subr.mxu0 0.0
        %2502 = vmatpush2.msra.mxu0 0.0
        %2503 = vmatprep.subr.mxu0 0.0
        %2504 = vmatpush2.msra.mxu0 0.0
        %2505 = vmatprep.subr.mxu0 0.0
        %2506 = vmatpush2.msra.mxu0 0.0
        %2507 = vmatprep.subr.mxu0 0.0
        %2508 = vmatpush2.msra.mxu0 0.0
        %2509 = vmatprep.subr.mxu0 0.0
        %2510 = vmatpush2.msra.mxu0 0.0
        %2511 = vmatprep.subr.mxu0 0.0
        %2512 = vmatpush2.msra.mxu0 0.0
        %2513 = vmatprep.subr.mxu0 0.0
        %2514 = vmatpush2.msra.mxu0 0.0
        %2515 = vmatprep.subr.mxu0 0.0
        %2516 = vmatpush2.msra.mxu0 0.0
        %2517 = vmatprep.subr.mxu0 0.0
        %2518 = vmatpush2.msra.mxu0 0.0
        %2519 = vmatprep.subr.mxu0 0.0
        %2520 = vmatpush2.msra.mxu0 0.0
        %2521 = vmatprep.subr.mxu0 0.0
        %2522 = vmatpush2.msra.mxu0 0.0
        %2523 = vmatprep.subr.mxu0 0.0
        %2524 = vmatpush2.msra.mxu0 0.0
        %2525 = vmatprep.subr.mxu0 0.0
        %2526 = vmatpush2.msra.mxu0 0.0
        %2527 = vmatprep.mubr.f32.mxu0 0.0
        %2528 = vmatmul.mubr.f32.gmra.mxu0 %v2211
        %v2529 = vpop.f32.mrf.mxu0
        %v2530 = vadd.f32 %v2208, %v2529
        %v2531 = vpop.f32.mrf.mxu0
        %v2532 = vadd.f32 %v2208, %v2531
        %2533 = vdwg.mxu0
        %2534 = vmatprep.subr.mxu0 0.0
        %2535 = vmatpush1.msra.mxu0 0.0
        %2536 = vmatprep.subr.mxu0 0.0
        %2537 = vmatpush1.msra.mxu0 0.0
        %2538 = vmatprep.subr.mxu0 %v2242
        %2539 = vmatpush1.msra.mxu0 %v2239
        %2540 = vmatprep.subr.mxu0 %v2189
        %2541 = vmatpush1.msra.mxu0 %v2188
        %2542 = vmatprep.subr.mxu0 %v2177
        %2543 = vmatpush1.msra.mxu0 %v2176
        %2544 = vmatprep.subr.mxu0 %v2165
        %2545 = vmatpush1.msra.mxu0 %v2164
        %2546 = vmatprep.subr.mxu0 %v2153
        %2547 = vmatpush1.msra.mxu0 %v2152
        %2548 = vmatprep.subr.mxu0 %v2141
        %2549 = vmatpush1.msra.mxu0 %v2140
        %2550 = vmatprep.subr.mxu0 %v2129
        %2551 = vmatpush1.msra.mxu0 %v2128
        %2552 = vmatprep.subr.mxu0 %v2117
        %2553 = vmatpush1.msra.mxu0 %v2116
        %2554 = vmatprep.subr.mxu0 %v2105
        %2555 = vmatpush1.msra.mxu0 %v2104
        %2556 = vmatprep.subr.mxu0 %v2093
        %2557 = vmatpush1.msra.mxu0 %v2092
        %2558 = vmatprep.subr.mxu0 %v2081
        %2559 = vmatpush1.msra.mxu0 %v2080
        %2560 = vmatprep.subr.mxu0 %v2069
        %2561 = vmatpush1.msra.mxu0 %v2068
        %2562 = vmatprep.subr.mxu0 %v2057
        %2563 = vmatpush1.msra.mxu0 %v2056
        %2564 = vmatprep.subr.mxu0 %v2045
        %2565 = vmatpush1.msra.mxu0 %v2044
        %2566 = vmatprep.subr.mxu0 0.0
        %2567 = vmatpush2.msra.mxu0 0.0
        %2568 = vmatprep.subr.mxu0 0.0
        %2569 = vmatpush2.msra.mxu0 0.0
        %2570 = vmatprep.subr.mxu0 0.0
        %2571 = vmatpush2.msra.mxu0 0.0
        %2572 = vmatprep.subr.mxu0 0.0
        %2573 = vmatpush2.msra.mxu0 0.0
        %2574 = vmatprep.subr.mxu0 0.0
        %2575 = vmatpush2.msra.mxu0 0.0
        %2576 = vmatprep.subr.mxu0 0.0
        %2577 = vmatpush2.msra.mxu0 0.0
        %2578 = vmatprep.subr.mxu0 0.0
        %2579 = vmatpush2.msra.mxu0 0.0
        %2580 = vmatprep.subr.mxu0 0.0
        %2581 = vmatpush2.msra.mxu0 0.0
        %2582 = vmatprep.subr.mxu0 0.0
        %2583 = vmatpush2.msra.mxu0 0.0
        %2584 = vmatprep.subr.mxu0 0.0
        %2585 = vmatpush2.msra.mxu0 0.0
        %2586 = vmatprep.subr.mxu0 0.0
        %2587 = vmatpush2.msra.mxu0 0.0
        %2588 = vmatprep.subr.mxu0 0.0
        %2589 = vmatpush2.msra.mxu0 0.0
        %2590 = vmatprep.subr.mxu0 0.0
        %2591 = vmatpush2.msra.mxu0 0.0
        %2592 = vmatprep.subr.mxu0 0.0
        %2593 = vmatpush2.msra.mxu0 0.0
        %2594 = vmatprep.subr.mxu0 0.0
        %2595 = vmatpush2.msra.mxu0 0.0
        %2596 = vmatprep.subr.mxu0 0.0
        %2597 = vmatpush2.msra.mxu0 0.0
        %2598 = vmatprep.mubr.f32.mxu0 0.0
        %2599 = vmatmul.mubr.f32.gmra.mxu0 %v2211
        %v2600 = vpop.f32.mrf.mxu0
        %v2601 = vadd.f32 %v2208, %v2600
        %v2602 = vpop.f32.mrf.mxu0
        %v2603 = vadd.f32 %v2208, %v2602
        %2604 = vdwg.mxu0
        %2605 = vmatprep.subr.mxu0 0.0
        %2606 = vmatpush1.msra.mxu0 0.0
        %2607 = vmatprep.subr.mxu0 0.0
        %2608 = vmatpush1.msra.mxu0 0.0
        %2609 = vmatprep.subr.mxu0 %v2248
        %2610 = vmatpush1.msra.mxu0 %v2245
        %2611 = vmatprep.subr.mxu0 %v2191
        %2612 = vmatpush1.msra.mxu0 %v2190
        %2613 = vmatprep.subr.mxu0 %v2179
        %2614 = vmatpush1.msra.mxu0 %v2178
        %2615 = vmatprep.subr.mxu0 %v2167
        %2616 = vmatpush1.msra.mxu0 %v2166
        %2617 = vmatprep.subr.mxu0 %v2155
        %2618 = vmatpush1.msra.mxu0 %v2154
        %2619 = vmatprep.subr.mxu0 %v2143
        %2620 = vmatpush1.msra.mxu0 %v2142
        %2621 = vmatprep.subr.mxu0 %v2131
        %2622 = vmatpush1.msra.mxu0 %v2130
        %2623 = vmatprep.subr.mxu0 %v2119
        %2624 = vmatpush1.msra.mxu0 %v2118
        %2625 = vmatprep.subr.mxu0 %v2107
        %2626 = vmatpush1.msra.mxu0 %v2106
        %2627 = vmatprep.subr.mxu0 %v2095
        %2628 = vmatpush1.msra.mxu0 %v2094
        %2629 = vmatprep.subr.mxu0 %v2083
        %2630 = vmatpush1.msra.mxu0 %v2082
        %2631 = vmatprep.subr.mxu0 %v2071
        %2632 = vmatpush1.msra.mxu0 %v2070
        %2633 = vmatprep.subr.mxu0 %v2059
        %2634 = vmatpush1.msra.mxu0 %v2058
        %2635 = vmatprep.subr.mxu0 %v2047
        %2636 = vmatpush1.msra.mxu0 %v2046
        %2637 = vmatprep.subr.mxu0 0.0
        %2638 = vmatpush2.msra.mxu0 0.0
        %2639 = vmatprep.subr.mxu0 0.0
        %2640 = vmatpush2.msra.mxu0 0.0
        %2641 = vmatprep.subr.mxu0 0.0
        %2642 = vmatpush2.msra.mxu0 0.0
        %2643 = vmatprep.subr.mxu0 0.0
        %2644 = vmatpush2.msra.mxu0 0.0
        %2645 = vmatprep.subr.mxu0 0.0
        %2646 = vmatpush2.msra.mxu0 0.0
        %2647 = vmatprep.subr.mxu0 0.0
        %2648 = vmatpush2.msra.mxu0 0.0
        %2649 = vmatprep.subr.mxu0 0.0
        %2650 = vmatpush2.msra.mxu0 0.0
        %2651 = vmatprep.subr.mxu0 0.0
        %2652 = vmatpush2.msra.mxu0 0.0
        %2653 = vmatprep.subr.mxu0 0.0
        %2654 = vmatpush2.msra.mxu0 0.0
        %2655 = vmatprep.subr.mxu0 0.0
        %2656 = vmatpush2.msra.mxu0 0.0
        %2657 = vmatprep.subr.mxu0 0.0
        %2658 = vmatpush2.msra.mxu0 0.0
        %2659 = vmatprep.subr.mxu0 0.0
        %2660 = vmatpush2.msra.mxu0 0.0
        %2661 = vmatprep.subr.mxu0 0.0
        %2662 = vmatpush2.msra.mxu0 0.0
        %2663 = vmatprep.subr.mxu0 0.0
        %2664 = vmatpush2.msra.mxu0 0.0
        %2665 = vmatprep.subr.mxu0 0.0
        %2666 = vmatpush2.msra.mxu0 0.0
        %2667 = vmatprep.subr.mxu0 0.0
        %2668 = vmatpush2.msra.mxu0 0.0
        %2669 = vmatprep.mubr.f32.mxu0 0.0
        %2670 = vmatmul.mubr.f32.gmra.mxu0 %v2211
        %v2671 = vpop.f32.mrf.mxu0
        %v2672 = vadd.f32 %v2208, %v2671
        %v2673 = vpop.f32.mrf.mxu0
        %v2674 = vadd.f32 %v2208, %v2673
        %2675 = vdwg.mxu0
        %2676 = vst [vmem:[%s285] sm:$0xff] %v2317
        %2677 = vst [vmem:[%s285 + $0x8] sm:$0xff] %v2319
        %2678 = vst [vmem:[%s285 + $0x10] sm:$0xff] %v2388
        %2679 = vst [vmem:[%s285 + $0x18] sm:$0xff] %v2390
        %2680 = vst [vmem:[%s285 + $0x20] sm:$0xff] %v2459
        %2681 = vst [vmem:[%s285 + $0x28] sm:$0xff] %v2461
        %2682 = vst [vmem:[%s285 + $0x30] sm:$0xff] %v2530
        %2683 = vst [vmem:[%s285 + $0x38] sm:$0xff] %v2532
        %2684 = vst [vmem:[%s285 + $0x40] sm:$0xff] %v2601
        %2685 = vst [vmem:[%s285 + $0x48] sm:$0xff] %v2603
        %2686 = vst [vmem:[%s285 + $0x50] sm:$0xff] %v2672
        %2687 = vst [vmem:[%s285 + $0x58] sm:$0xff] %v2674
        %s2688 = sand.u32 %s148, 1
        %s2689 = scalar_lea.sflag [#allocation5], %s2688
        %s2690 = sand.u32 %s148, 1
        %s2691 = smul.addr %s2690, 96
        %s2692 = scalar_lea.vmem [#allocation8], %s2691
        // Predicated region
        $region45: #{tpu_custom_call.1} parent=35 // pred_check
          %p2693 = pneg %p158
        $region46: #{tpu_custom_call.1} parent=35 // pred_check_branch
          %2695 = sbr.rel (%p2693) target = $region48
        $region47: #{tpu_custom_call.1} parent=35 // pred_region
          %s2696 = smul.u32 12, %s29
          %s2698 = ssub.s32 1536, 1536
          %2699 = vsyncadd %s2689, %s2698
          %s2700 = smul.addr %s28, 48
          %s2701 = sadd.s32 %s2696, %s2700
          %s2702 = smul.addr %s2701, 128
          %s2703 = scalar_lea.hbm %s4, %s2702
          %s2705 = sshll.u32 %s2692, 4
          %s2706 = int_to_ptr.vmem [resolvable:$true] %s2705
          %2708 = dma.vmem_to_hbm [thread:$0]  %s2706, 1536, %s2703, %s2689
        $region48: #{tpu_custom_call.1} parent=35 // pred_fallthru
          _
      $region36: #{tpu_custom_call.1} parent=5 // pred_fallthru
        _
      %p2709 = scmp.le.s32.totalorder 2, %s19
      // Predicated region
      $region49: #{tpu_custom_call.1} parent=5 // pred_check
        %p2710 = pneg %p2709
      $region50: #{tpu_custom_call.1} parent=5 // pred_check_branch
        %2712 = sbr.rel (%p2710) target = $region52
      $region51: #{tpu_custom_call.1} parent=5 // pred_region
        %s2713 = ssub.s32 %s19, 2
        // Predicated region
        $region53: #{tpu_custom_call.1} parent=51 // pred_check
          %p2714 = pneg %p164
        $region54: #{tpu_custom_call.1} parent=51 // pred_check_branch
          %2716 = sbr.rel (%p2714) target = $region56
        $region55: #{tpu_custom_call.1} parent=51 // pred_region
          %s2717 = sand.u32 %s149, 1
          %s2718 = scalar_lea.sflag [#allocation5], %s2717
          %s2719 = sand.u32 %s149, 1
          %s2720 = smul.addr %s2719, 96
          %s2721 = scalar_lea.vmem [#allocation8], %s2720
          %2722 = dma.done %s2718, 1536
        $region56: #{tpu_custom_call.1} parent=51 // pred_fallthru
          _
      $region52: #{tpu_custom_call.1} parent=5 // pred_fallthru
        _
    $region6: #{tpu_custom_call.1} parent=1 // loop_footer
      %s23 = sadd.s32 1, %s19
    $region7: #{tpu_custom_call.1} parent=1 // loop_footer_branch
      %18 = sbr.rel target = $region3
    $region8: #{tpu_custom_call.1} parent=1 // loop_exit
      _
    %2723 = vsyncpa [#allocation4], 1
    %s2724 = scalar_lea.sflag [#allocation4], 1
    %2725 = vsyncpa %s2724, 1
    %2726 = vsyncpa [#allocation7], 1
    %s2727 = scalar_lea.sflag [#allocation7], 1
    %2728 = vsyncpa %s2727, 1
    %2729 = vsyncpa [#allocation5], 1
    %s2730 = scalar_lea.sflag [#allocation5], 1
    %2731 = vsyncpa %s2730, 1

</llo_original>
